<compile_context>
chip_gen: v7x
topology: tpu7x:2x2x1
jax: 0.10.0
libtpu: 0.0.40
codegen_flags: <defaults>
</compile_context>

<pallas_src>
import jax
import jax.numpy as jnp
import numpy as np
from jax import lax
from jax.experimental import pallas as pl
from jax.experimental.pallas import tpu as pltpu

_BN_EPS = 1e-5
_LANE = 128


def _round_up(v, m):
    return (v + m - 1) // m * m


# --------------------------------- kernel ----------------------------------- #

def _make_block_kernel(*, identity, ho, wo):
    """conv1+bn1+relu -> conv2+bn2 -> shortcut -> relu for B_IMG images whose
    output pixels are stacked along the matmul M axis."""

    def kernel(xc_ref, w1_ref, b1_ref, w2_ref, b2_ref,
               hh_ref, ww_ref, xsc_ref, wsc_ref, bsc_ref,
               o_ref, y1_ref):
        m, cp = o_ref.shape
        cd = w2_ref.dtype                      # matmul operand dtype (bf16 default)

        # ---- conv1 + bn1 + relu : ONE MXU matmul (K = 9*cin, zero padded) ----
        acc1 = jnp.dot(xc_ref[...], w1_ref[...],
                       preferred_element_type=jnp.float32)
        # f32 bias + ReLU on the VPU; conv1 output stays resident in VMEM.
        y1_ref[...] = jnp.maximum(acc1 + b1_ref[...], 0.0)

        # Per-row output coordinates (tiny int32 vectors, precomputed host-side).
        hh = hh_ref[...]
        ww = ww_ref[...]
        h_ok = (hh >= 1, None, hh < ho - 1)    # tap row offset dh = -1, 0, +1
        w_ok = (ww >= 1, None, ww < wo - 1)    # tap col offset dw = -1, 0, +1

        # ---- conv2 + bn2 : 9 tap matmuls (K = cp).  Each tap is an XLU
        # sublane roll of the flat conv1 output + a VPU boundary mask; the f32
        # scratch is reloaded per tap (bounded live range), cast to bf16 only
        # right before the MXU.
        acc2 = jnp.zeros((m, cp), jnp.float32)
        for kh in range(3):
            for kw in range(3):
                dh, dw = kh - 1, kw - 1
                d = dh * wo + dw               # flat row shift of this tap
                tap = y1_ref[...]
                if d != 0:
                    # out[r] = y1[(r + d) % m]   (np.roll convention => shift = -d)
                    tap = pltpu.roll(tap, (-d) % m, 0)
                conds = [c for c in (h_ok[kh], w_ok[kw]) if c is not None]
                if conds:
                    valid = conds[0] if len(conds) == 1 else conds[0] & conds[1]
                    tap = jnp.where(valid, tap, 0.0)
                acc2 = acc2 + jnp.dot(tap.astype(cd), w2_ref[kh * 3 + kw],
                                      preferred_element_type=jnp.float32)
        acc2 = acc2 + b2_ref[...]

        # ---- shortcut + final relu ----
        if identity:
            acc2 = acc2 + xsc_ref[...]         # exact f32 residual add (no matmul)
        else:
            acc2 = acc2 + jnp.dot(xsc_ref[...], wsc_ref[...],
                                  preferred_element_type=jnp.float32) + bsc_ref[...]
        o_ref[...] = jnp.maximum(acc2, 0.0).astype(o_ref.dtype)

    return kernel


# --------------------------- wrapper-side helpers ---------------------------- #

def _fold_bn(gamma, beta, mean, var, eps=_BN_EPS):
    s = gamma / jnp.sqrt(var + eps)
    return s, beta - mean * s


def _im2col_3x3(x_nhwc, stride, ho, wo, k1p, dtype):
    """(N,H,W,C) -> (N*ho*wo, k1p) patch matrix of a 3x3/pad=1 conv.
    Column order (kh, kw, ci); zero-padded to k1p lanes.  Input is tiny, so the
    one-off wrapper-side gather is cheaper than 9 tiny in-kernel matmuls."""
    n, _, _, cin = x_nhwc.shape
    xp = jnp.pad(x_nhwc, ((0, 0), (1, 1), (1, 1), (0, 0)))
    cols = []
    for kh in range(3):
        for kw in range(3):
            cols.append(xp[:, kh:kh + (ho - 1) * stride + 1:stride,
                            kw:kw + (wo - 1) * stride + 1:stride, :])
    col = jnp.concatenate(cols, axis=-1).reshape(n * ho * wo, 9 * cin)
    return jnp.pad(col, ((0, 0), (0, k1p - 9 * cin))).astype(dtype)


def _prep_w1(w_oihw, scale, k1p, cp, dtype):
    cout, cin = w_oihw.shape[:2]
    w = jnp.transpose(w_oihw, (2, 3, 1, 0)).reshape(9 * cin, cout) * scale
    return jnp.pad(w, ((0, k1p - 9 * cin), (0, cp - cout))).astype(dtype)


def _prep_w2(w_oihw, scale, cp, dtype):
    cout, cin = w_oihw.shape[:2]
    w = jnp.transpose(w_oihw, (2, 3, 1, 0)) * scale            # (3,3,cin,cout)
    w = jnp.pad(w, ((0, 0), (0, 0), (0, cp - cin), (0, cp - cout)))
    return w.reshape(9, cp, cp).astype(dtype)


def _pick_b_img(n, p_rows, target_rows=512):
    """Images per grid step: fill the MXU M dim (~target_rows rows, also bounds
    the f32 accumulator working set) while keeping >=2 grid steps so both
    TensorCores (v7x) / megacore halves stay busy."""
    best = 1
    for b in range(1, n + 1):
        if n % b != 0:
            continue
        if n >= 2 and n // b < 2:
            continue
        if b * p_rows <= max(target_rows, p_rows):
            best = b
    return best


# ------------------------------ BasicBlock fwd ------------------------------- #

def basic_block_pallas(x_nchw, params, stride, *, compute_dtype=jnp.bfloat16):
    x = jnp.transpose(x_nchw, (0, 2, 3, 1)).astype(jnp.float32)    # NCHW -> NHWC
    n, h, w, cin = x.shape
    planes = params["conv1_w"].shape[0]
    identity = (stride == 1) and (cin == planes)

    ho = (h + 2 - 3) // stride + 1
    wo = (w + 2 - 3) // stride + 1
    p_rows = ho * wo
    cp = _round_up(planes, _LANE)               # lane-dense N / aligned conv2 K
    k1p = _round_up(9 * cin, _LANE)             # lane-aligned conv1 K

    b_img = _pick_b_img(n, p_rows)
    grid = (n // b_img,)
    m_blk = b_img * p_rows
    m_tot = n * p_rows

    # Fold BN (inference statistics) into conv weights + a single f32 bias.
    s1, b1 = _fold_bn(params["bn1_gamma"], params["bn1_beta"],
                      params["bn1_mean"], params["bn1_var"])
    s2, b2 = _fold_bn(params["bn2_gamma"], params["bn2_beta"],
                      params["bn2_mean"], params["bn2_var"])
    w1 = _prep_w1(params["conv1_w"], s1, k1p, cp, compute_dtype)
    w2 = _prep_w2(params["conv2_w"], s2, cp, compute_dtype)
    b1p = jnp.pad(b1, (0, cp - planes)).reshape(1, cp).astype(jnp.float32)
    b2p = jnp.pad(b2, (0, cp - planes)).reshape(1, cp).astype(jnp.float32)

    # conv1 patch matrix: one K=9*cin matmul instead of 9 tiny matmuls.
    xc = _im2col_3x3(x, stride, ho, wo, k1p, compute_dtype)

    # Shortcut operands.
    if identity:
        # Exact f32 residual add inside the kernel (no matmul, no bf16 rounding).
        xsc = jnp.pad(x, ((0, 0), (0, 0), (0, 0), (0, cp - cin))).reshape(m_tot, cp)
        wsc = jnp.zeros((cin, cp), compute_dtype)                 # unused dummy
        bscp = jnp.zeros((1, cp), jnp.float32)                    # unused dummy
    else:
        ssc, bsc = _fold_bn(params["bn_sc_gamma"], params["bn_sc_beta"],
                            params["bn_sc_mean"], params["bn_sc_var"])
        wsc = params["sc_w"].reshape(planes, cin).T * ssc          # (cin, planes)
        wsc = jnp.pad(wsc, ((0, 0), (0, cp - planes))).astype(compute_dtype)
        bscp = jnp.pad(bsc, (0, cp - planes)).reshape(1, cp).astype(jnp.float32)
        xsc = x[:, ::stride, ::stride, :][:, :ho, :wo, :]
        xsc = xsc.reshape(m_tot, cin).astype(compute_dtype)
    csc = xsc.shape[-1]

    # Per-output-row (h, w) coordinates for the conv2 boundary masks.
    hh = jnp.asarray(np.tile(np.repeat(np.arange(ho, dtype=np.int32), wo), n)
                     ).reshape(m_tot, 1)
    ww = jnp.asarray(np.tile(np.tile(np.arange(wo, dtype=np.int32), ho), n)
                     ).reshape(m_tot, 1)

    kernel = _make_block_kernel(identity=identity, ho=ho, wo=wo)
    out_dtype = compute_dtype                    # bf16 default -> halved writeback

    flops = (2 * m_tot * cp * (k1p + 9 * cp)
             + (0 if identity else 2 * m_tot * csc * cp))
    bytes_accessed = int(sum(int(a.size) * a.dtype.itemsize
                             for a in (xc, w1, b1p, w2, b2p, hh, ww, xsc, wsc, bscp))
                         + m_tot * cp * jnp.dtype(out_dtype).itemsize)

    out = pl.pallas_call(
        kernel,
        out_shape=jax.ShapeDtypeStruct((m_tot, cp), out_dtype),
        grid=grid,
        in_specs=[
            pl.BlockSpec((m_blk, k1p), lambda i: (i, 0)),          # conv1 im2col
            pl.BlockSpec((k1p, cp), lambda i: (0, 0)),             # w1
            pl.BlockSpec((1, cp), lambda i: (0, 0)),               # bn1 bias
            pl.BlockSpec((9, cp, cp), lambda i: (0, 0, 0)),        # w2 (per tap)
            pl.BlockSpec((1, cp), lambda i: (0, 0)),               # bn2 bias
            pl.BlockSpec((m_blk, 1), lambda i: (i, 0)),            # row h index
            pl.BlockSpec((m_blk, 1), lambda i: (i, 0)),            # row w index
            pl.BlockSpec((m_blk, csc), lambda i: (i, 0)),          # shortcut input
            pl.BlockSpec(wsc.shape, lambda i: (0, 0)),             # shortcut weight
            pl.BlockSpec((1, cp), lambda i: (0, 0)),               # shortcut bias
        ],
        out_specs=pl.BlockSpec((m_blk, cp), lambda i: (i, 0)),
        scratch_shapes=[pltpu.VMEM((m_blk, cp), jnp.float32)],     # conv1 output
        compiler_params=pltpu.CompilerParams(
            dimension_semantics=("parallel",),
            # Per-step working set is ~2 MiB; explicit limit keeps headroom on
            # every generation incl. v7x's 64 MiB VMEM.
            vmem_limit_bytes=32 * 1024 * 1024),
        cost_estimate=pl.CostEstimate(flops=flops, transcendentals=0,
                                      bytes_accessed=bytes_accessed),
    )(xc, w1, b1p, w2, b2p, hh, ww, xsc, wsc, bscp)

    out = out.reshape(n, ho, wo, cp)[..., :planes]                 # drop padded lanes
    return jnp.transpose(out, (0, 3, 1, 2)).astype(jnp.float32)    # back to NCHW


# ----------------------------- pure-JAX reference ---------------------------- #

def basic_block_reference(x_nchw, params, stride):
    x = jnp.transpose(x_nchw, (0, 2, 3, 1)).astype(jnp.float32)
    cin = x.shape[-1]
    planes = params["conv1_w"].shape[0]
    has_projection = (stride != 1) or (cin != planes)

    def conv(v, w_oihw, s, pad):
        w = jnp.transpose(w_oihw, (2, 3, 1, 0))        # HWIO
        return lax.conv_general_dilated(
            v, w, (s, s), ((pad, pad), (pad, pad)),
            dimension_numbers=("NHWC", "HWIO", "NHWC"),
            precision=lax.Precision.HIGHEST)

    def bn(v, g, b, m, var):
        return (v - m) / jnp.sqrt(var + _BN_EPS) * g + b

    out = jax.nn.relu(bn(conv(x, params["conv1_w"], stride, 1),
                         params["bn1_gamma"], params["bn1_beta"],
                         params["bn1_mean"], params["bn1_var"]))
    out = bn(conv(out, params["conv2_w"], 1, 1),
             params["bn2_gamma"], params["bn2_beta"],
             params["bn2_mean"], params["bn2_var"])
    if has_projection:
        sc = bn(conv(x, params["sc_w"], stride, 0),
                params["bn_sc_gamma"], params["bn_sc_beta"],
                params["bn_sc_mean"], params["bn_sc_var"])
    else:
        sc = x
    out = jax.nn.relu(out + sc)
    return jnp.transpose(out, (0, 3, 1, 2))


# ------------------------------ param creation ------------------------------- #

def init_basic_block_params(key, in_planes, planes, stride):
    ks = jax.random.split(key, 16)

    def conv_w(k, shape, fan_in):
        bound = 1.0 / np.sqrt(fan_in)
        return jax.random.uniform(k, shape, jnp.float32, -bound, bound)

    def bn_params(k):
        k1, k2, k3, k4 = jax.random.split(k, 4)
        return (1.0 + 0.1 * jax.random.normal(k1, (planes,), jnp.float32),   # gamma
                0.1 * jax.random.normal(k2, (planes,), jnp.float32),         # beta
                0.05 * jax.random.normal(k3, (planes,), jnp.float32),        # running mean
                jax.random.uniform(k4, (planes,), jnp.float32, 0.5, 1.5))    # running var

    p = {}
    p["conv1_w"] = conv_w(ks[0], (planes, in_planes, 3, 3), in_planes * 9)
    p["bn1_gamma"], p["bn1_beta"], p["bn1_mean"], p["bn1_var"] = bn_params(ks[1])
    p["conv2_w"] = conv_w(ks[2], (planes, planes, 3, 3), planes * 9)
    p["bn2_gamma"], p["bn2_beta"], p["bn2_mean"], p["bn2_var"] = bn_params(ks[3])
    if stride != 1 or in_planes != planes:
        p["sc_w"] = conv_w(ks[4], (planes, in_planes, 1, 1), in_planes)
        (p["bn_sc_gamma"], p["bn_sc_beta"],
         p["bn_sc_mean"], p["bn_sc_var"]) = bn_params(ks[5])
    return p


# ----------------------------------- main ------------------------------------ #

if __name__ == "__main__":
    key = jax.random.PRNGKey(0)
    k_x1, k_p1, k_x2, k_p2 = jax.random.split(key, 4)

    # Case 1: projection shortcut (stride=2, in_planes != planes).
    x1 = jax.random.normal(k_x1, (2, 4, 16, 16), jnp.float32)      # NCHW
    params1 = init_basic_block_params(k_p1, in_planes=4, planes=8, stride=2)
    # Case 2: identity shortcut (stride=1, in_planes == planes).
    x2 = jax.random.normal(k_x2, (2, 8, 16, 16), jnp.float32)      # NCHW
    params2 = init_basic_block_params(k_p2, in_planes=8, planes=8, stride=1)

    ref1 = jax.block_until_ready(basic_block_reference(x1, params1, 2))
    ref2 = jax.block_until_ready(basic_block_reference(x2, params2, 1))

    # f32 operand path.  Tolerance leaves room for the TPU matmul default
    # precision while still catching any structural error (those are O(1)).
    out1 = jax.block_until_ready(
        basic_block_pallas(x1, params1, 2, compute_dtype=jnp.float32))
    out2 = jax.block_until_ready(
        basic_block_pallas(x2, params2, 1, compute_dtype=jnp.float32))
    np.testing.assert_allclose(np.asarray(out1), np.asarray(ref1), rtol=5e-2, atol=5e-2)
    np.testing.assert_allclose(np.asarray(out2), np.asarray(ref2), rtol=5e-2, atol=5e-2)
    assert out1.shape == (2, 8, 8, 8) and out2.shape == (2, 8, 16, 16)

    # Default bf16 operand path (MXU-native on v6e/v7x, halved DMA/writeback);
    # looser tolerance for bf16 input/weight/output rounding.
    out1b = jax.block_until_ready(basic_block_pallas(x1, params1, 2))
    out2b = jax.block_until_ready(basic_block_pallas(x2, params2, 1))
    np.testing.assert_allclose(np.asarray(out1b), np.asarray(ref1), rtol=1e-1, atol=1e-1)
    np.testing.assert_allclose(np.asarray(out2b), np.asarray(ref2), rtol=1e-1, atol=1e-1)

    print("KERNEL_OK")
</pallas_src>

<mosaic_0001>
module attributes {stable_mosaic.version = 11 : i64} {
  func.func @kernel(%arg0: i32, %arg1: memref<64x128xf32, #tpu.memory_space<vmem>>, %arg2: memref<128x128xf32, #tpu.memory_space<vmem>>, %arg3: memref<1x128xf32, #tpu.memory_space<vmem>>, %arg4: memref<9x128x128xf32, #tpu.memory_space<vmem>>, %arg5: memref<1x128xf32, #tpu.memory_space<vmem>>, %arg6: memref<64x1xi32, #tpu.memory_space<vmem>>, %arg7: memref<64x1xi32, #tpu.memory_space<vmem>>, %arg8: memref<64x4xf32, #tpu.memory_space<vmem>>, %arg9: memref<4x128xf32, #tpu.memory_space<vmem>>, %arg10: memref<1x128xf32, #tpu.memory_space<vmem>>, %arg11: memref<64x128xf32, #tpu.memory_space<vmem>>, %arg12: memref<64x128xf32, #tpu.memory_space<vmem>>) attributes {dimension_semantics = [#tpu.dimension_semantics<parallel>], iteration_bounds = array<i64: 2>, scalar_prefetch = 0 : i64, scratch_operands = 1 : i64, tpu.core_type = #tpu.core_type<tc>, window_params = [{transform_indices = @transform_0, window_bounds = array<i64: 64, 128>}, {pipeline_mode = #tpu.pipeline_mode<synchronous>, transform_indices = @transform_1, window_bounds = array<i64: 128, 128>}, {pipeline_mode = #tpu.pipeline_mode<synchronous>, transform_indices = @transform_2, window_bounds = array<i64: 1, 128>}, {pipeline_mode = #tpu.pipeline_mode<synchronous>, transform_indices = @transform_3, window_bounds = array<i64: 9, 128, 128>}, {pipeline_mode = #tpu.pipeline_mode<synchronous>, transform_indices = @transform_4, window_bounds = array<i64: 1, 128>}, {transform_indices = @transform_5, window_bounds = array<i64: 64, 1>}, {transform_indices = @transform_6, window_bounds = array<i64: 64, 1>}, {transform_indices = @transform_7, window_bounds = array<i64: 64, 4>}, {pipeline_mode = #tpu.pipeline_mode<synchronous>, transform_indices = @transform_8, window_bounds = array<i64: 4, 128>}, {pipeline_mode = #tpu.pipeline_mode<synchronous>, transform_indices = @transform_9, window_bounds = array<i64: 1, 128>}, {transform_indices = @transform_10, window_bounds = array<i64: 64, 128>}]} {
    %c0 = arith.constant 0 : index
    %c0_0 = arith.constant 0 : index
    %0 = vector.load %arg1[%c0, %c0_0] : memref<64x128xf32, #tpu.memory_space<vmem>>, vector<64x128xf32>
    %c0_1 = arith.constant 0 : index
    %c0_2 = arith.constant 0 : index
    %1 = vector.load %arg2[%c0_1, %c0_2] : memref<128x128xf32, #tpu.memory_space<vmem>>, vector<128x128xf32>
    %cst = arith.constant dense<0.000000e+00> : vector<64x128xf32>
    %2 = tpu.matmul %0, %1, %cst {dimension_numbers = #tpu.dot_dimension_numbers<[1], [0], [0], [1], [0, 0, 1, 1], [], []>} : vector<64x128xf32>, vector<128x128xf32>, vector<64x128xf32> -> vector<64x128xf32>
    %c0_3 = arith.constant 0 : index
    %c0_4 = arith.constant 0 : index
    %3 = vector.load %arg3[%c0_3, %c0_4] : memref<1x128xf32, #tpu.memory_space<vmem>>, vector<1x128xf32>
    %4 = vector.broadcast %3 : vector<1x128xf32> to vector<64x128xf32>
    %5 = arith.addf %2, %4 : vector<64x128xf32>
    %cst_5 = arith.constant 0.000000e+00 : f32
    %6 = vector.broadcast %cst_5 : f32 to vector<64x128xf32>
    %7 = arith.maximumf %5, %6 : vector<64x128xf32>
    %c0_6 = arith.constant 0 : index
    %c0_7 = arith.constant 0 : index
    %8 = vector.load %arg12[%c0_6, %c0_7] : memref<64x128xf32, #tpu.memory_space<vmem>>, vector<64x128xf32>
    tpu.vector_store %arg12[%c0_6, %c0_7], %7 {strides = array<i32>} : memref<64x128xf32, #tpu.memory_space<vmem>>, vector<64x128xf32>,
    %c0_8 = arith.constant 0 : index
    %c0_9 = arith.constant 0 : index
    %9 = vector.load %arg6[%c0_8, %c0_9] : memref<64x1xi32, #tpu.memory_space<vmem>>, vector<64x1xi32>
    %c0_10 = arith.constant 0 : index
    %c0_11 = arith.constant 0 : index
    %10 = vector.load %arg7[%c0_10, %c0_11] : memref<64x1xi32, #tpu.memory_space<vmem>>, vector<64x1xi32>
    %c1_i32 = arith.constant 1 : i32
    %11 = vector.broadcast %c1_i32 : i32 to vector<64x1xi32>
    %12 = arith.cmpi sge, %9, %11 : vector<64x1xi32>
    %c7_i32 = arith.constant 7 : i32
    %13 = vector.broadcast %c7_i32 : i32 to vector<64x1xi32>
    %14 = arith.cmpi slt, %9, %13 : vector<64x1xi32>
    %c1_i32_12 = arith.constant 1 : i32
    %15 = vector.broadcast %c1_i32_12 : i32 to vector<64x1xi32>
    %16 = arith.cmpi sge, %10, %15 : vector<64x1xi32>
    %c7_i32_13 = arith.constant 7 : i32
    %17 = vector.broadcast %c7_i32_13 : i32 to vector<64x1xi32>
    %18 = arith.cmpi slt, %10, %17 : vector<64x1xi32>
    %cst_14 = arith.constant 0.000000e+00 : f32
    %19 = vector.broadcast %cst_14 : f32 to vector<64x128xf32>
    %c0_15 = arith.constant 0 : index
    %c0_16 = arith.constant 0 : index
    %20 = vector.load %arg12[%c0_15, %c0_16] : memref<64x128xf32, #tpu.memory_space<vmem>>, vector<64x128xf32>
    %c9_i32 = arith.constant 9 : i32
    %21 = tpu.dynamic_rotate %20 by %c9_i32 dim 0 : vector<64x128xf32>, i32 -> vector<64x128xf32>
    %22 = arith.andi %12, %16 : vector<64x1xi1>
    %cst_17 = arith.constant 0.000000e+00 : f32
    %23 = vector.shape_cast %22 : vector<64x1xi1> to vector<64x1xi1>
    %24 = vector.broadcast %23 : vector<64x1xi1> to vector<64x128xi1>
    %25 = vector.broadcast %cst_17 : f32 to vector<64x128xf32>
    %26 = arith.select %24, %21, %25 : vector<64x128xi1>, vector<64x128xf32>
    %c0_18 = arith.constant 0 : index
    %c0_19 = arith.constant 0 : index
    %c0_20 = arith.constant 0 : index
    %27 = vector.load %arg4[%c0_18, %c0_19, %c0_20] : memref<9x128x128xf32, #tpu.memory_space<vmem>>, vector<1x128x128xf32>
    %28 = vector.shape_cast %27 : vector<1x128x128xf32> to vector<128x128xf32>
    %cst_21 = arith.constant dense<0.000000e+00> : vector<64x128xf32>
    %29 = tpu.matmul %26, %28, %cst_21 {dimension_numbers = #tpu.dot_dimension_numbers<[1], [0], [0], [1], [0, 0, 1, 1], [], []>} : vector<64x128xf32>, vector<128x128xf32>, vector<64x128xf32> -> vector<64x128xf32>
    %30 = arith.addf %19, %29 : vector<64x128xf32>
    %c0_22 = arith.constant 0 : index
    %c0_23 = arith.constant 0 : index
    %31 = vector.load %arg12[%c0_22, %c0_23] : memref<64x128xf32, #tpu.memory_space<vmem>>, vector<64x128xf32>
    %c8_i32 = arith.constant 8 : i32
    %32 = tpu.dynamic_rotate %31 by %c8_i32 dim 0 : vector<64x128xf32>, i32 -> vector<64x128xf32>
    %cst_24 = arith.constant 0.000000e+00 : f32
    %33 = vector.shape_cast %12 : vector<64x1xi1> to vector<64x1xi1>
    %34 = vector.broadcast %33 : vector<64x1xi1> to vector<64x128xi1>
    %35 = vector.broadcast %cst_24 : f32 to vector<64x128xf32>
    %36 = arith.select %34, %32, %35 : vector<64x128xi1>, vector<64x128xf32>
    %c1 = arith.constant 1 : index
    %c0_25 = arith.constant 0 : index
    %c0_26 = arith.constant 0 : index
    %37 = vector.load %arg4[%c1, %c0_25, %c0_26] : memref<9x128x128xf32, #tpu.memory_space<vmem>>, vector<1x128x128xf32>
    %38 = vector.shape_cast %37 : vector<1x128x128xf32> to vector<128x128xf32>
    %cst_27 = arith.constant dense<0.000000e+00> : vector<64x128xf32>
    %39 = tpu.matmul %36, %38, %cst_27 {dimension_numbers = #tpu.dot_dimension_numbers<[1], [0], [0], [1], [0, 0, 1, 1], [], []>} : vector<64x128xf32>, vector<128x128xf32>, vector<64x128xf32> -> vector<64x128xf32>
    %40 = arith.addf %30, %39 : vector<64x128xf32>
    %c0_28 = arith.constant 0 : index
    %c0_29 = arith.constant 0 : index
    %41 = vector.load %arg12[%c0_28, %c0_29] : memref<64x128xf32, #tpu.memory_space<vmem>>, vector<64x128xf32>
    %c7_i32_30 = arith.constant 7 : i32
    %42 = tpu.dynamic_rotate %41 by %c7_i32_30 dim 0 : vector<64x128xf32>, i32 -> vector<64x128xf32>
    %43 = arith.andi %12, %18 : vector<64x1xi1>
    %cst_31 = arith.constant 0.000000e+00 : f32
    %44 = vector.shape_cast %43 : vector<64x1xi1> to vector<64x1xi1>
    %45 = vector.broadcast %44 : vector<64x1xi1> to vector<64x128xi1>
    %46 = vector.broadcast %cst_31 : f32 to vector<64x128xf32>
    %47 = arith.select %45, %42, %46 : vector<64x128xi1>, vector<64x128xf32>
    %c2 = arith.constant 2 : index
    %c0_32 = arith.constant 0 : index
    %c0_33 = arith.constant 0 : index
    %48 = vector.load %arg4[%c2, %c0_32, %c0_33] : memref<9x128x128xf32, #tpu.memory_space<vmem>>, vector<1x128x128xf32>
    %49 = vector.shape_cast %48 : vector<1x128x128xf32> to vector<128x128xf32>
    %cst_34 = arith.constant dense<0.000000e+00> : vector<64x128xf32>
    %50 = tpu.matmul %47, %49, %cst_34 {dimension_numbers = #tpu.dot_dimension_numbers<[1], [0], [0], [1], [0, 0, 1, 1], [], []>} : vector<64x128xf32>, vector<128x128xf32>, vector<64x128xf32> -> vector<64x128xf32>
    %51 = arith.addf %40, %50 : vector<64x128xf32>
    %c0_35 = arith.constant 0 : index
    %c0_36 = arith.constant 0 : index
    %52 = vector.load %arg12[%c0_35, %c0_36] : memref<64x128xf32, #tpu.memory_space<vmem>>, vector<64x128xf32>
    %c1_i32_37 = arith.constant 1 : i32
    %53 = tpu.dynamic_rotate %52 by %c1_i32_37 dim 0 : vector<64x128xf32>, i32 -> vector<64x128xf32>
    %cst_38 = arith.constant 0.000000e+00 : f32
    %54 = vector.shape_cast %16 : vector<64x1xi1> to vector<64x1xi1>
    %55 = vector.broadcast %54 : vector<64x1xi1> to vector<64x128xi1>
    %56 = vector.broadcast %cst_38 : f32 to vector<64x128xf32>
    %57 = arith.select %55, %53, %56 : vector<64x128xi1>, vector<64x128xf32>
    %c3 = arith.constant 3 : index
    %c0_39 = arith.constant 0 : index
    %c0_40 = arith.constant 0 : index
    %58 = vector.load %arg4[%c3, %c0_39, %c0_40] : memref<9x128x128xf32, #tpu.memory_space<vmem>>, vector<1x128x128xf32>
    %59 = vector.shape_cast %58 : vector<1x128x128xf32> to vector<128x128xf32>
    %cst_41 = arith.constant dense<0.000000e+00> : vector<64x128xf32>
    %60 = tpu.matmul %57, %59, %cst_41 {dimension_numbers = #tpu.dot_dimension_numbers<[1], [0], [0], [1], [0, 0, 1, 1], [], []>} : vector<64x128xf32>, vector<128x128xf32>, vector<64x128xf32> -> vector<64x128xf32>
    %61 = arith.addf %51, %60 : vector<64x128xf32>
    %c0_42 = arith.constant 0 : index
    %c0_43 = arith.constant 0 : index
    %62 = vector.load %arg12[%c0_42, %c0_43] : memref<64x128xf32, #tpu.memory_space<vmem>>, vector<64x128xf32>
    %c4 = arith.constant 4 : index
    %c0_44 = arith.constant 0 : index
    %c0_45 = arith.constant 0 : index
    %63 = vector.load %arg4[%c4, %c0_44, %c0_45] : memref<9x128x128xf32, #tpu.memory_space<vmem>>, vector<1x128x128xf32>
    %64 = vector.shape_cast %63 : vector<1x128x128xf32> to vector<128x128xf32>
    %cst_46 = arith.constant dense<0.000000e+00> : vector<64x128xf32>
    %65 = tpu.matmul %62, %64, %cst_46 {dimension_numbers = #tpu.dot_dimension_numbers<[1], [0], [0], [1], [0, 0, 1, 1], [], []>} : vector<64x128xf32>, vector<128x128xf32>, vector<64x128xf32> -> vector<64x128xf32>
    %66 = arith.addf %61, %65 : vector<64x128xf32>
    %c0_47 = arith.constant 0 : index
    %c0_48 = arith.constant 0 : index
    %67 = vector.load %arg12[%c0_47, %c0_48] : memref<64x128xf32, #tpu.memory_space<vmem>>, vector<64x128xf32>
    %c63_i32 = arith.constant 63 : i32
    %68 = tpu.dynamic_rotate %67 by %c63_i32 dim 0 : vector<64x128xf32>, i32 -> vector<64x128xf32>
    %cst_49 = arith.constant 0.000000e+00 : f32
    %69 = vector.shape_cast %18 : vector<64x1xi1> to vector<64x1xi1>
    %70 = vector.broadcast %69 : vector<64x1xi1> to vector<64x128xi1>
    %71 = vector.broadcast %cst_49 : f32 to vector<64x128xf32>
    %72 = arith.select %70, %68, %71 : vector<64x128xi1>, vector<64x128xf32>
    %c5 = arith.constant 5 : index
    %c0_50 = arith.constant 0 : index
    %c0_51 = arith.constant 0 : index
    %73 = vector.load %arg4[%c5, %c0_50, %c0_51] : memref<9x128x128xf32, #tpu.memory_space<vmem>>, vector<1x128x128xf32>
    %74 = vector.shape_cast %73 : vector<1x128x128xf32> to vector<128x128xf32>
    %cst_52 = arith.constant dense<0.000000e+00> : vector<64x128xf32>
    %75 = tpu.matmul %72, %74, %cst_52 {dimension_numbers = #tpu.dot_dimension_numbers<[1], [0], [0], [1], [0, 0, 1, 1], [], []>} : vector<64x128xf32>, vector<128x128xf32>, vector<64x128xf32> -> vector<64x128xf32>
    %76 = arith.addf %66, %75 : vector<64x128xf32>
    %c0_53 = arith.constant 0 : index
    %c0_54 = arith.constant 0 : index
    %77 = vector.load %arg12[%c0_53, %c0_54] : memref<64x128xf32, #tpu.memory_space<vmem>>, vector<64x128xf32>
    %c57_i32 = arith.constant 57 : i32
    %78 = tpu.dynamic_rotate %77 by %c57_i32 dim 0 : vector<64x128xf32>, i32 -> vector<64x128xf32>
    %79 = arith.andi %14, %16 : vector<64x1xi1>
    %cst_55 = arith.constant 0.000000e+00 : f32
    %80 = vector.shape_cast %79 : vector<64x1xi1> to vector<64x1xi1>
    %81 = vector.broadcast %80 : vector<64x1xi1> to vector<64x128xi1>
    %82 = vector.broadcast %cst_55 : f32 to vector<64x128xf32>
    %83 = arith.select %81, %78, %82 : vector<64x128xi1>, vector<64x128xf32>
    %c6 = arith.constant 6 : index
    %c0_56 = arith.constant 0 : index
    %c0_57 = arith.constant 0 : index
    %84 = vector.load %arg4[%c6, %c0_56, %c0_57] : memref<9x128x128xf32, #tpu.memory_space<vmem>>, vector<1x128x128xf32>
    %85 = vector.shape_cast %84 : vector<1x128x128xf32> to vector<128x128xf32>
    %cst_58 = arith.constant dense<0.000000e+00> : vector<64x128xf32>
    %86 = tpu.matmul %83, %85, %cst_58 {dimension_numbers = #tpu.dot_dimension_numbers<[1], [0], [0], [1], [0, 0, 1, 1], [], []>} : vector<64x128xf32>, vector<128x128xf32>, vector<64x128xf32> -> vector<64x128xf32>
    %87 = arith.addf %76, %86 : vector<64x128xf32>
    %c0_59 = arith.constant 0 : index
    %c0_60 = arith.constant 0 : index
    %88 = vector.load %arg12[%c0_59, %c0_60] : memref<64x128xf32, #tpu.memory_space<vmem>>, vector<64x128xf32>
    %c56_i32 = arith.constant 56 : i32
    %89 = tpu.dynamic_rotate %88 by %c56_i32 dim 0 : vector<64x128xf32>, i32 -> vector<64x128xf32>
    %cst_61 = arith.constant 0.000000e+00 : f32
    %90 = vector.shape_cast %14 : vector<64x1xi1> to vector<64x1xi1>
    %91 = vector.broadcast %90 : vector<64x1xi1> to vector<64x128xi1>
    %92 = vector.broadcast %cst_61 : f32 to vector<64x128xf32>
    %93 = arith.select %91, %89, %92 : vector<64x128xi1>, vector<64x128xf32>
    %c7 = arith.constant 7 : index
    %c0_62 = arith.constant 0 : index
    %c0_63 = arith.constant 0 : index
    %94 = vector.load %arg4[%c7, %c0_62, %c0_63] : memref<9x128x128xf32, #tpu.memory_space<vmem>>, vector<1x128x128xf32>
    %95 = vector.shape_cast %94 : vector<1x128x128xf32> to vector<128x128xf32>
    %cst_64 = arith.constant dense<0.000000e+00> : vector<64x128xf32>
    %96 = tpu.matmul %93, %95, %cst_64 {dimension_numbers = #tpu.dot_dimension_numbers<[1], [0], [0], [1], [0, 0, 1, 1], [], []>} : vector<64x128xf32>, vector<128x128xf32>, vector<64x128xf32> -> vector<64x128xf32>
    %97 = arith.addf %87, %96 : vector<64x128xf32>
    %c0_65 = arith.constant 0 : index
    %c0_66 = arith.constant 0 : index
    %98 = vector.load %arg12[%c0_65, %c0_66] : memref<64x128xf32, #tpu.memory_space<vmem>>, vector<64x128xf32>
    %c55_i32 = arith.constant 55 : i32
    %99 = tpu.dynamic_rotate %98 by %c55_i32 dim 0 : vector<64x128xf32>, i32 -> vector<64x128xf32>
    %100 = arith.andi %14, %18 : vector<64x1xi1>
    %cst_67 = arith.constant 0.000000e+00 : f32
    %101 = vector.shape_cast %100 : vector<64x1xi1> to vector<64x1xi1>
    %102 = vector.broadcast %101 : vector<64x1xi1> to vector<64x128xi1>
    %103 = vector.broadcast %cst_67 : f32 to vector<64x128xf32>
    %104 = arith.select %102, %99, %103 : vector<64x128xi1>, vector<64x128xf32>
    %c8 = arith.constant 8 : index
    %c0_68 = arith.constant 0 : index
    %c0_69 = arith.constant 0 : index
    %105 = vector.load %arg4[%c8, %c0_68, %c0_69] : memref<9x128x128xf32, #tpu.memory_space<vmem>>, vector<1x128x128xf32>
    %106 = vector.shape_cast %105 : vector<1x128x128xf32> to vector<128x128xf32>
    %cst_70 = arith.constant dense<0.000000e+00> : vector<64x128xf32>
    %107 = tpu.matmul %104, %106, %cst_70 {dimension_numbers = #tpu.dot_dimension_numbers<[1], [0], [0], [1], [0, 0, 1, 1], [], []>} : vector<64x128xf32>, vector<128x128xf32>, vector<64x128xf32> -> vector<64x128xf32>
    %108 = arith.addf %97, %107 : vector<64x128xf32>
    %c0_71 = arith.constant 0 : index
    %c0_72 = arith.constant 0 : index
    %109 = vector.load %arg5[%c0_71, %c0_72] : memref<1x128xf32, #tpu.memory_space<vmem>>, vector<1x128xf32>
    %110 = vector.broadcast %109 : vector<1x128xf32> to vector<64x128xf32>
    %111 = arith.addf %108, %110 : vector<64x128xf32>
    %c0_73 = arith.constant 0 : index
    %c0_74 = arith.constant 0 : index
    %112 = vector.load %arg8[%c0_73, %c0_74] : memref<64x4xf32, #tpu.memory_space<vmem>>, vector<64x4xf32>
    %c0_75 = arith.constant 0 : index
    %c0_76 = arith.constant 0 : index
    %113 = vector.load %arg9[%c0_75, %c0_76] : memref<4x128xf32, #tpu.memory_space<vmem>>, vector<4x128xf32>
    %cst_77 = arith.constant dense<0.000000e+00> : vector<64x128xf32>
    %114 = tpu.matmul %112, %113, %cst_77 {dimension_numbers = #tpu.dot_dimension_numbers<[1], [0], [0], [1], [0, 0, 1, 1], [], []>} : vector<64x4xf32>, vector<4x128xf32>, vector<64x128xf32> -> vector<64x128xf32>
    %115 = arith.addf %111, %114 : vector<64x128xf32>
    %c0_78 = arith.constant 0 : index
    %c0_79 = arith.constant 0 : index
    %116 = vector.load %arg10[%c0_78, %c0_79] : memref<1x128xf32, #tpu.memory_space<vmem>>, vector<1x128xf32>
    %117 = vector.broadcast %116 : vector<1x128xf32> to vector<64x128xf32>
    %118 = arith.addf %115, %117 : vector<64x128xf32>
    %cst_80 = arith.constant 0.000000e+00 : f32
    %119 = vector.broadcast %cst_80 : f32 to vector<64x128xf32>
    %120 = arith.maximumf %118, %119 : vector<64x128xf32>
    %c0_81 = arith.constant 0 : index
    %c0_82 = arith.constant 0 : index
    %121 = vector.load %arg11[%c0_81, %c0_82] : memref<64x128xf32, #tpu.memory_space<vmem>>, vector<64x128xf32>
    tpu.vector_store %arg11[%c0_81, %c0_82], %120 {strides = array<i32>} : memref<64x128xf32, #tpu.memory_space<vmem>>, vector<64x128xf32>,
    return
  }
  func.func @transform_0(%arg0: i32) -> (i32, i32) {
    %c0_i32 = arith.constant 0 : i32
    %c0_i32_0 = arith.constant 0 : i32
    return %arg0, %c0_i32 : i32, i32
  }
  func.func @transform_1(%arg0: i32) -> (i32, i32) {
    %c0_i32 = arith.constant 0 : i32
    %c0_i32_0 = arith.constant 0 : i32
    %c0_i32_1 = arith.constant 0 : i32
    return %c0_i32, %c0_i32_0 : i32, i32
  }
  func.func @transform_2(%arg0: i32) -> (i32, i32) {
    %c0_i32 = arith.constant 0 : i32
    %c0_i32_0 = arith.constant 0 : i32
    %c0_i32_1 = arith.constant 0 : i32
    return %c0_i32, %c0_i32_0 : i32, i32
  }
  func.func @transform_3(%arg0: i32) -> (i32, i32, i32) {
    %c0_i32 = arith.constant 0 : i32
    %c0_i32_0 = arith.constant 0 : i32
    %c0_i32_1 = arith.constant 0 : i32
    %c0_i32_2 = arith.constant 0 : i32
    return %c0_i32, %c0_i32_0, %c0_i32_1 : i32, i32, i32
  }
  func.func @transform_4(%arg0: i32) -> (i32, i32) {
    %c0_i32 = arith.constant 0 : i32
    %c0_i32_0 = arith.constant 0 : i32
    %c0_i32_1 = arith.constant 0 : i32
    return %c0_i32, %c0_i32_0 : i32, i32
  }
  func.func @transform_5(%arg0: i32) -> (i32, i32) {
    %c0_i32 = arith.constant 0 : i32
    %c0_i32_0 = arith.constant 0 : i32
    return %arg0, %c0_i32 : i32, i32
  }
  func.func @transform_6(%arg0: i32) -> (i32, i32) {
    %c0_i32 = arith.constant 0 : i32
    %c0_i32_0 = arith.constant 0 : i32
    return %arg0, %c0_i32 : i32, i32
  }
  func.func @transform_7(%arg0: i32) -> (i32, i32) {
    %c0_i32 = arith.constant 0 : i32
    %c0_i32_0 = arith.constant 0 : i32
    return %arg0, %c0_i32 : i32, i32
  }
  func.func @transform_8(%arg0: i32) -> (i32, i32) {
    %c0_i32 = arith.constant 0 : i32
    %c0_i32_0 = arith.constant 0 : i32
    %c0_i32_1 = arith.constant 0 : i32
    return %c0_i32, %c0_i32_0 : i32, i32
  }
  func.func @transform_9(%arg0: i32) -> (i32, i32) {
    %c0_i32 = arith.constant 0 : i32
    %c0_i32_0 = arith.constant 0 : i32
    %c0_i32_1 = arith.constant 0 : i32
    return %c0_i32, %c0_i32_0 : i32, i32
  }
  func.func @transform_10(%arg0: i32) -> (i32, i32) {
    %c0_i32 = arith.constant 0 : i32
    %c0_i32_0 = arith.constant 0 : i32
    return %arg0, %c0_i32 : i32, i32
  }
}

</mosaic_0001>

<llo_original>
// kernel: tpu_custom_call.1
$region0: #{tpu_custom_call.1}
  #allocation0 [shape = 'u32[]', space=smem, size = 0x4, offset = 0x4, fixed_abs, tag = 'smem constant byte address 0x4 - core index']
  #allocation1 [shape = 'u32[144,128]{1,0:T(1,128)}', space=vmem, size = 0x12000, scoped, tag = 'internal scratch']
  #allocation2 [shape = 'f32[64,128]{1,0:T(8,128)}', space=vmem, size = 0x8000, scoped, tag = 'scratch operand']
  %s0 = inlined_call_operand.vmem [shape: f32[128,128], index: 0, kind: input, shape index: {}]
  %s1 = inlined_call_operand.vmem [shape: f32[128,128], index: 1, kind: input, shape index: {}]
  %s2 = inlined_call_operand.vmem [shape: f32[1,128], index: 2, kind: input, shape index: {}]
  %s3 = inlined_call_operand.hbm [shape: f32[9,128,128], index: 3, kind: input, shape index: {}]
  %s4 = inlined_call_operand.vmem [shape: f32[1,128], index: 4, kind: input, shape index: {}]
  %s5 = inlined_call_operand.vmem [shape: s32[128,1], index: 5, kind: input, shape index: {}]
  %s6 = inlined_call_operand.vmem [shape: s32[128,1], index: 6, kind: input, shape index: {}]
  %s7 = inlined_call_operand.vmem [shape: f32[128,4], index: 7, kind: input, shape index: {}]
  %s8 = inlined_call_operand.vmem [shape: f32[4,128], index: 8, kind: input, shape index: {}]
  %s9 = inlined_call_operand.vmem [shape: f32[1,128], index: 9, kind: input, shape index: {}]
  %s10 = inlined_call_operand.hbm [shape: f32[128,128], index: 10, kind: output, shape index: {}]
  %s11 = sld [smem:[#allocation0]]
  $region77: #{tpu_custom_call.1} parent=0
    _
  %s13 = ssub.s32 1, %s11
  %s14 = scalar_select 0, %s13, %s11
  $region1: #{tpu_custom_call.1} parent=0
    #allocation3 [shape = 'u8[589824]{0}', space=vmem, size = 0x90000, scoped, tag = 'input window, operand 3, single buffered']
    #allocation4 [shape = 's32[2]{0}', space=sflag, size = 0x8, scoped, tag = 'scoped memory for tpu_custom_call.1']
    #allocation5 [shape = 's32[2]{0}', space=sflag, size = 0x8, scoped, tag = 'scoped memory for tpu_custom_call.1']
    #allocation6 [shape = 'u8[65536]{0}', space=vmem, size = 0x10000, scoped, tag = 'output window, operand 0']
    %15 = vsyncpa [#allocation4], 0
    %16 = vsyncpa [#allocation5], 0
    %s17 = scalar_lea.sflag [#allocation5], 1
    %18 = vsyncpa %s17, 0
    loop: start=0, step=1, limit=4
    $region2: #{tpu_custom_call.1} parent=1 // loop_pre_header
      _
    $region3: #{tpu_custom_call.1} parent=1 // loop_header
      %s20 = sphi 0, %s24
      %p21 = scmp.ge.s32.totalorder %s20, 4
      %s30 = sphi 0, %s32
      %s33 = sphi 0, %s30
      %s34 = sphi 0, %s33
      %s50 = sphi 0, %s34
      %s54 = sphi 0, %s54
      %s56 = sphi 0, %s54
      %s57 = sphi 0, %s56
      %s71 = sphi 0, %s57
      %s75 = sphi 0, %s75
      %s77 = sphi 0, %s75
      %s78 = sphi 0, %s77
      %s92 = sphi 0, %s78
      %s96 = sphi 0, %s96
      %s98 = sphi 0, %s96
      %s99 = sphi 0, %s98
      %s113 = sphi 0, %s99
      %s117 = sphi 0, %s117
      %s119 = sphi 0, %s117
      %s120 = sphi 0, %s119
      %s134 = sphi 0, %s120
      %s140 = sphi 0, %s142
      %s143 = sphi 0, %s140
      %s144 = sphi 0, %s143
      %s160 = sphi 0, %s144
      %s166 = sphi 0, %s168
      %s169 = sphi 0, %s166
      %s170 = sphi 0, %s169
      %s186 = sphi 0, %s170
      %s192 = sphi 0, %s194
      %s195 = sphi 0, %s192
      %s196 = sphi 0, %s195
      %s212 = sphi 0, %s196
      %s216 = sphi 0, %s216
      %s218 = sphi 0, %s216
      %s219 = sphi 0, %s218
      %s233 = sphi 0, %s219
      %s237 = sphi 0, %s237
      %s239 = sphi 0, %s237
      %s240 = sphi 0, %s239
      %s254 = sphi 0, %s240
      %s260 = sphi 0, %s262
      %s263 = sphi 0, %s260
      %s264 = sphi 0, %s263
      %s280 = sphi 0, %s264
    $region4: #{tpu_custom_call.1} parent=1 // loop_header_branch
      %23 = sbr.rel (%p21) target = $region8
    $region5: #{tpu_custom_call.1} parent=1 // loop_body
      %s25 = ssub.s32 %s20, 1
      %s26 = ssub.s32 %s20, 2
      %s27 = sadd.s32 %s20, 1
      %s28 = ssub.s32 %s20, %s27
      %p29 = scmp.eq.s32.totalorder %s28, 0
      %s31 = sadd.s32 %s30, 1
      %s32 = scalar_select %p29, %s30, %s31
      %p35 = pneg %p29
      %p36 = scmp.eq.s32.totalorder %s20, 1
      %p37 = por %p35, %p36
      %p38 = scmp.ne.s32.totalorder %s30, %s33
      %p39 = scmp.eq.s32.totalorder %s20, 0
      %p40 = por %p38, %p39
      %p41 = scmp.ne.s32.totalorder %s30, %s33
      %p42 = scmp.eq.s32.totalorder %s25, 1
      %p43 = por %p41, %p42
      %p44 = scmp.ne.s32.totalorder %s33, %s34
      %p45 = scmp.eq.s32.totalorder %s25, 0
      %p46 = por %p44, %p45
      %p47 = scmp.ne.s32.totalorder %s33, %s34
      %p48 = scmp.eq.s32.totalorder %s26, 1
      %p49 = por %p47, %p48
      %p51 = scmp.ne.s32.totalorder %s34, %s50
      %p52 = scmp.eq.s32.totalorder %s26, 0
      %p53 = por %p51, %p52
      %s55 = sadd.s32 %s54, 1
      %p58 = scmp.eq.s32.totalorder %s20, 1
      %p59 = scmp.ne.s32.totalorder %s54, %s56
      %p60 = scmp.eq.s32.totalorder %s20, 0
      %p61 = por %p59, %p60
      %p62 = scmp.ne.s32.totalorder %s54, %s56
      %p63 = scmp.eq.s32.totalorder %s25, 1
      %p64 = por %p62, %p63
      %p65 = scmp.ne.s32.totalorder %s56, %s57
      %p66 = scmp.eq.s32.totalorder %s25, 0
      %p67 = por %p65, %p66
      %p68 = scmp.ne.s32.totalorder %s56, %s57
      %p69 = scmp.eq.s32.totalorder %s26, 1
      %p70 = por %p68, %p69
      %p72 = scmp.ne.s32.totalorder %s57, %s71
      %p73 = scmp.eq.s32.totalorder %s26, 0
      %p74 = por %p72, %p73
      %s76 = sadd.s32 %s75, 1
      %p79 = scmp.eq.s32.totalorder %s20, 1
      %p80 = scmp.ne.s32.totalorder %s75, %s77
      %p81 = scmp.eq.s32.totalorder %s20, 0
      %p82 = por %p80, %p81
      %p83 = scmp.ne.s32.totalorder %s75, %s77
      %p84 = scmp.eq.s32.totalorder %s25, 1
      %p85 = por %p83, %p84
      %p86 = scmp.ne.s32.totalorder %s77, %s78
      %p87 = scmp.eq.s32.totalorder %s25, 0
      %p88 = por %p86, %p87
      %p89 = scmp.ne.s32.totalorder %s77, %s78
      %p90 = scmp.eq.s32.totalorder %s26, 1
      %p91 = por %p89, %p90
      %p93 = scmp.ne.s32.totalorder %s78, %s92
      %p94 = scmp.eq.s32.totalorder %s26, 0
      %p95 = por %p93, %p94
      %s97 = sadd.s32 %s96, 1
      %p100 = scmp.eq.s32.totalorder %s20, 1
      %p101 = scmp.ne.s32.totalorder %s96, %s98
      %p102 = scmp.eq.s32.totalorder %s20, 0
      %p103 = por %p101, %p102
      %p104 = scmp.ne.s32.totalorder %s96, %s98
      %p105 = scmp.eq.s32.totalorder %s25, 1
      %p106 = por %p104, %p105
      %p107 = scmp.ne.s32.totalorder %s98, %s99
      %p108 = scmp.eq.s32.totalorder %s25, 0
      %p109 = por %p107, %p108
      %p110 = scmp.ne.s32.totalorder %s98, %s99
      %p111 = scmp.eq.s32.totalorder %s26, 1
      %p112 = por %p110, %p111
      %p114 = scmp.ne.s32.totalorder %s99, %s113
      %p115 = scmp.eq.s32.totalorder %s26, 0
      %p116 = por %p114, %p115
      %s118 = sadd.s32 %s117, 1
      %p121 = scmp.eq.s32.totalorder %s20, 1
      %p122 = scmp.ne.s32.totalorder %s117, %s119
      %p123 = scmp.eq.s32.totalorder %s20, 0
      %p124 = por %p122, %p123
      %p125 = scmp.ne.s32.totalorder %s117, %s119
      %p126 = scmp.eq.s32.totalorder %s25, 1
      %p127 = por %p125, %p126
      %p128 = scmp.ne.s32.totalorder %s119, %s120
      %p129 = scmp.eq.s32.totalorder %s25, 0
      %p130 = por %p128, %p129
      %p131 = scmp.ne.s32.totalorder %s119, %s120
      %p132 = scmp.eq.s32.totalorder %s26, 1
      %p133 = por %p131, %p132
      %p135 = scmp.ne.s32.totalorder %s120, %s134
      %p136 = scmp.eq.s32.totalorder %s26, 0
      %p137 = por %p135, %p136
      %s138 = ssub.s32 %s20, %s27
      %p139 = scmp.eq.s32.totalorder %s138, 0
      %s141 = sadd.s32 %s140, 1
      %s142 = scalar_select %p139, %s140, %s141
      %p145 = pneg %p139
      %p146 = scmp.eq.s32.totalorder %s20, 1
      %p147 = por %p145, %p146
      %p148 = scmp.ne.s32.totalorder %s140, %s143
      %p149 = scmp.eq.s32.totalorder %s20, 0
      %p150 = por %p148, %p149
      %p151 = scmp.ne.s32.totalorder %s140, %s143
      %p152 = scmp.eq.s32.totalorder %s25, 1
      %p153 = por %p151, %p152
      %p154 = scmp.ne.s32.totalorder %s143, %s144
      %p155 = scmp.eq.s32.totalorder %s25, 0
      %p156 = por %p154, %p155
      %p157 = scmp.ne.s32.totalorder %s143, %s144
      %p158 = scmp.eq.s32.totalorder %s26, 1
      %p159 = por %p157, %p158
      %p161 = scmp.ne.s32.totalorder %s144, %s160
      %p162 = scmp.eq.s32.totalorder %s26, 0
      %p163 = por %p161, %p162
      %s164 = ssub.s32 %s20, %s27
      %p165 = scmp.eq.s32.totalorder %s164, 0
      %s167 = sadd.s32 %s166, 1
      %s168 = scalar_select %p165, %s166, %s167
      %p171 = pneg %p165
      %p172 = scmp.eq.s32.totalorder %s20, 1
      %p173 = por %p171, %p172
      %p174 = scmp.ne.s32.totalorder %s166, %s169
      %p175 = scmp.eq.s32.totalorder %s20, 0
      %p176 = por %p174, %p175
      %p177 = scmp.ne.s32.totalorder %s166, %s169
      %p178 = scmp.eq.s32.totalorder %s25, 1
      %p179 = por %p177, %p178
      %p180 = scmp.ne.s32.totalorder %s169, %s170
      %p181 = scmp.eq.s32.totalorder %s25, 0
      %p182 = por %p180, %p181
      %p183 = scmp.ne.s32.totalorder %s169, %s170
      %p184 = scmp.eq.s32.totalorder %s26, 1
      %p185 = por %p183, %p184
      %p187 = scmp.ne.s32.totalorder %s170, %s186
      %p188 = scmp.eq.s32.totalorder %s26, 0
      %p189 = por %p187, %p188
      %s190 = ssub.s32 %s20, %s27
      %p191 = scmp.eq.s32.totalorder %s190, 0
      %s193 = sadd.s32 %s192, 1
      %s194 = scalar_select %p191, %s192, %s193
      %p197 = pneg %p191
      %p198 = scmp.eq.s32.totalorder %s20, 1
      %p199 = por %p197, %p198
      %p200 = scmp.ne.s32.totalorder %s192, %s195
      %p201 = scmp.eq.s32.totalorder %s20, 0
      %p202 = por %p200, %p201
      %p203 = scmp.ne.s32.totalorder %s192, %s195
      %p204 = scmp.eq.s32.totalorder %s25, 1
      %p205 = por %p203, %p204
      %p206 = scmp.ne.s32.totalorder %s195, %s196
      %p207 = scmp.eq.s32.totalorder %s25, 0
      %p208 = por %p206, %p207
      %p209 = scmp.ne.s32.totalorder %s195, %s196
      %p210 = scmp.eq.s32.totalorder %s26, 1
      %p211 = por %p209, %p210
      %p213 = scmp.ne.s32.totalorder %s196, %s212
      %p214 = scmp.eq.s32.totalorder %s26, 0
      %p215 = por %p213, %p214
      %s217 = sadd.s32 %s216, 1
      %p220 = scmp.eq.s32.totalorder %s20, 1
      %p221 = scmp.ne.s32.totalorder %s216, %s218
      %p222 = scmp.eq.s32.totalorder %s20, 0
      %p223 = por %p221, %p222
      %p224 = scmp.ne.s32.totalorder %s216, %s218
      %p225 = scmp.eq.s32.totalorder %s25, 1
      %p226 = por %p224, %p225
      %p227 = scmp.ne.s32.totalorder %s218, %s219
      %p228 = scmp.eq.s32.totalorder %s25, 0
      %p229 = por %p227, %p228
      %p230 = scmp.ne.s32.totalorder %s218, %s219
      %p231 = scmp.eq.s32.totalorder %s26, 1
      %p232 = por %p230, %p231
      %p234 = scmp.ne.s32.totalorder %s219, %s233
      %p235 = scmp.eq.s32.totalorder %s26, 0
      %p236 = por %p234, %p235
      %s238 = sadd.s32 %s237, 1
      %p241 = scmp.eq.s32.totalorder %s20, 1
      %p242 = scmp.ne.s32.totalorder %s237, %s239
      %p243 = scmp.eq.s32.totalorder %s20, 0
      %p244 = por %p242, %p243
      %p245 = scmp.ne.s32.totalorder %s237, %s239
      %p246 = scmp.eq.s32.totalorder %s25, 1
      %p247 = por %p245, %p246
      %p248 = scmp.ne.s32.totalorder %s239, %s240
      %p249 = scmp.eq.s32.totalorder %s25, 0
      %p250 = por %p248, %p249
      %p251 = scmp.ne.s32.totalorder %s239, %s240
      %p252 = scmp.eq.s32.totalorder %s26, 1
      %p253 = por %p251, %p252
      %p255 = scmp.ne.s32.totalorder %s240, %s254
      %p256 = scmp.eq.s32.totalorder %s26, 0
      %p257 = por %p255, %p256
      %s258 = ssub.s32 %s20, %s27
      %p259 = scmp.eq.s32.totalorder %s258, 0
      %s261 = sadd.s32 %s260, 1
      %s262 = scalar_select %p259, %s260, %s261
      %p265 = pneg %p259
      %p266 = scmp.eq.s32.totalorder %s20, 1
      %p267 = por %p265, %p266
      %p268 = scmp.ne.s32.totalorder %s260, %s263
      %p269 = scmp.eq.s32.totalorder %s20, 0
      %p270 = por %p268, %p269
      %p271 = scmp.ne.s32.totalorder %s260, %s263
      %p272 = scmp.eq.s32.totalorder %s25, 1
      %p273 = por %p271, %p272
      %p274 = scmp.ne.s32.totalorder %s263, %s264
      %p275 = scmp.eq.s32.totalorder %s25, 0
      %p276 = por %p274, %p275
      %p277 = scmp.ne.s32.totalorder %s263, %s264
      %p278 = scmp.eq.s32.totalorder %s26, 1
      %p279 = por %p277, %p278
      %p281 = scmp.ne.s32.totalorder %s264, %s280
      %p282 = scmp.eq.s32.totalorder %s26, 0
      %p283 = por %p281, %p282
      %p284 = scmp.le.s32.totalorder 1, %s20
      %p285 = scmp.lt.s32.totalorder %s20, 3
      %p286 = pnand %p284, %p285
      %p287 = pneg %p286
      // Predicated region
      $region9: #{tpu_custom_call.1} parent=5 // pred_check
        _
      $region10: #{tpu_custom_call.1} parent=5 // pred_check_branch
        %289 = sbr.rel (%p286) target = $region12
      $region11: #{tpu_custom_call.1} parent=5 // pred_region
        %s290 = ssub.s32 %s20, 1
        // Predicated region
        $region13: #{tpu_custom_call.1} parent=11 // pred_check
          %p291 = pneg %p67
        $region14: #{tpu_custom_call.1} parent=11 // pred_check_branch
          %293 = sbr.rel (%p291) target = $region16
        $region15: #{tpu_custom_call.1} parent=11 // pred_region
          _
        $region16: #{tpu_custom_call.1} parent=11 // pred_fallthru
          _
        // Predicated region
        $region17: #{tpu_custom_call.1} parent=11 // pred_check
          %p294 = pneg %p88
        $region18: #{tpu_custom_call.1} parent=11 // pred_check_branch
          %296 = sbr.rel (%p294) target = $region20
        $region19: #{tpu_custom_call.1} parent=11 // pred_region
          _
        $region20: #{tpu_custom_call.1} parent=11 // pred_fallthru
          _
        // Predicated region
        $region21: #{tpu_custom_call.1} parent=11 // pred_check
          %p297 = pneg %p109
        $region22: #{tpu_custom_call.1} parent=11 // pred_check_branch
          %299 = sbr.rel (%p297) target = $region24
        $region23: #{tpu_custom_call.1} parent=11 // pred_region
          %s301 = ssub.s32 18432, 18432
          %302 = vsyncadd [#allocation4], %s301
          %s303 = sshll.u32 [#allocation3], 4
          %s304 = int_to_ptr.vmem [resolvable:$true] %s303
          %309 = dma.hbm_to_vmem [thread:$0]  %s3, 18432, %s304, [#allocation4], 128, 128, 8
        $region24: #{tpu_custom_call.1} parent=11 // pred_fallthru
          _
        // Predicated region
        $region25: #{tpu_custom_call.1} parent=11 // pred_check
          %p310 = pneg %p130
        $region26: #{tpu_custom_call.1} parent=11 // pred_check_branch
          %312 = sbr.rel (%p310) target = $region28
        $region27: #{tpu_custom_call.1} parent=11 // pred_region
          _
        $region28: #{tpu_custom_call.1} parent=11 // pred_fallthru
          _
        // Predicated region
        $region29: #{tpu_custom_call.1} parent=11 // pred_check
          %p313 = pneg %p229
        $region30: #{tpu_custom_call.1} parent=11 // pred_check_branch
          %315 = sbr.rel (%p313) target = $region32
        $region31: #{tpu_custom_call.1} parent=11 // pred_region
          _
        $region32: #{tpu_custom_call.1} parent=11 // pred_fallthru
          _
        // Predicated region
        $region33: #{tpu_custom_call.1} parent=11 // pred_check
          %p316 = pneg %p250
        $region34: #{tpu_custom_call.1} parent=11 // pred_check_branch
          %318 = sbr.rel (%p316) target = $region36
        $region35: #{tpu_custom_call.1} parent=11 // pred_region
          _
        $region36: #{tpu_custom_call.1} parent=11 // pred_fallthru
          _
      $region12: #{tpu_custom_call.1} parent=5 // pred_fallthru
        _
      %p319 = scmp.lt.s32.totalorder %s20, 2
      // Predicated region
      $region37: #{tpu_custom_call.1} parent=5 // pred_check
        %p320 = pneg %p319
      $region38: #{tpu_custom_call.1} parent=5 // pred_check_branch
        %322 = sbr.rel (%p320) target = $region40
      $region39: #{tpu_custom_call.1} parent=5 // pred_region
        // Predicated region
        $region41: #{tpu_custom_call.1} parent=39 // pred_check
          %p323 = pneg %p40
        $region42: #{tpu_custom_call.1} parent=39 // pred_check_branch
          %325 = sbr.rel (%p323) target = $region44
        $region43: #{tpu_custom_call.1} parent=39 // pred_region
          %s326 = smul.u32 8, %s20
          %p327 = scmp.lt.s32.totalorder %s326, 15
          %s328 = scalar_select %p327, %s326, 15
          %s329 = smul.addr %s328, 8
          %s330 = scalar_lea.vmem %s0, %s329
          %s331 = smul.u32 8, %s20
        $region44: #{tpu_custom_call.1} parent=39 // pred_fallthru
          _
        // Predicated region
        $region45: #{tpu_custom_call.1} parent=39 // pred_check
          %p332 = pneg %p150
        $region46: #{tpu_custom_call.1} parent=39 // pred_check_branch
          %334 = sbr.rel (%p332) target = $region48
        $region47: #{tpu_custom_call.1} parent=39 // pred_region
          %s335 = smul.u32 8, %s20
          %p336 = scmp.lt.s32.totalorder %s335, 15
          %s337 = scalar_select %p336, %s335, 15
          %s338 = smul.addr %s337, 8
          %s339 = scalar_lea.vmem %s5, %s338
          %s340 = smul.u32 8, %s20
        $region48: #{tpu_custom_call.1} parent=39 // pred_fallthru
          _
        // Predicated region
        $region49: #{tpu_custom_call.1} parent=39 // pred_check
          %p341 = pneg %p176
        $region50: #{tpu_custom_call.1} parent=39 // pred_check_branch
          %343 = sbr.rel (%p341) target = $region52
        $region51: #{tpu_custom_call.1} parent=39 // pred_region
          %s344 = smul.u32 8, %s20
          %p345 = scmp.lt.s32.totalorder %s344, 15
          %s346 = scalar_select %p345, %s344, 15
          %s347 = smul.addr %s346, 8
          %s348 = scalar_lea.vmem %s6, %s347
          %s349 = smul.u32 8, %s20
        $region52: #{tpu_custom_call.1} parent=39 // pred_fallthru
          _
        // Predicated region
        $region53: #{tpu_custom_call.1} parent=39 // pred_check
          %p350 = pneg %p202
        $region54: #{tpu_custom_call.1} parent=39 // pred_check_branch
          %352 = sbr.rel (%p350) target = $region56
        $region55: #{tpu_custom_call.1} parent=39 // pred_region
          %s353 = smul.u32 8, %s20
          %p354 = scmp.lt.s32.totalorder %s353, 15
          %s355 = scalar_select %p354, %s353, 15
          %s356 = smul.addr %s355, 8
          %s357 = scalar_lea.vmem %s7, %s356
          %s358 = smul.u32 8, %s20
        $region56: #{tpu_custom_call.1} parent=39 // pred_fallthru
          _
      $region40: #{tpu_custom_call.1} parent=5 // pred_fallthru
        _
      %p359 = scmp.le.s32.totalorder 1, %s20
      %p360 = scmp.lt.s32.totalorder %s20, 3
      %p361 = pnand %p359, %p360
      %p362 = pneg %p361
      // Predicated region
      $region57: #{tpu_custom_call.1} parent=5 // pred_check
        _
      $region58: #{tpu_custom_call.1} parent=5 // pred_check_branch
        %364 = sbr.rel (%p361) target = $region60
      $region59: #{tpu_custom_call.1} parent=5 // pred_region
        %s365 = ssub.s32 %s20, 1
        // Predicated region
        $region61: #{tpu_custom_call.1} parent=59 // pred_check
          %p366 = pneg %p109
        $region62: #{tpu_custom_call.1} parent=59 // pred_check_branch
          %368 = sbr.rel (%p366) target = $region64
        $region63: #{tpu_custom_call.1} parent=59 // pred_region
          %369 = dma.done [#allocation4], 18432
        $region64: #{tpu_custom_call.1} parent=59 // pred_fallthru
          _
        %s370 = smul.u32 8, %s25
        %p371 = scmp.lt.s32.totalorder %s370, 15
        %s372 = scalar_select %p371, %s370, 15
        %s373 = smul.addr %s372, 8
        %s374 = scalar_lea.vmem %s0, %s373
        %p375 = pneg %p46
        %p376 = pneg %p43
        %p377 = pneg %p67
        %p378 = pneg %p64
        %p379 = pneg %p88
        %p380 = pneg %p85
        %p381 = pneg %p109
        %p382 = pneg %p106
        %p383 = pneg %p130
        %p384 = pneg %p127
        %s385 = smul.u32 8, %s25
        %p386 = scmp.lt.s32.totalorder %s385, 15
        %s387 = scalar_select %p386, %s385, 15
        %s388 = smul.addr %s387, 8
        %s389 = scalar_lea.vmem %s5, %s388
        %p390 = pneg %p156
        %p391 = pneg %p153
        %s392 = smul.u32 8, %s25
        %p393 = scmp.lt.s32.totalorder %s392, 15
        %s394 = scalar_select %p393, %s392, 15
        %s395 = smul.addr %s394, 8
        %s396 = scalar_lea.vmem %s6, %s395
        %p397 = pneg %p182
        %p398 = pneg %p179
        %s399 = smul.u32 8, %s25
        %p400 = scmp.lt.s32.totalorder %s399, 15
        %s401 = scalar_select %p400, %s399, 15
        %s402 = smul.addr %s401, 8
        %s403 = scalar_lea.vmem %s7, %s402
        %p404 = pneg %p208
        %p405 = pneg %p205
        %p406 = pneg %p229
        %p407 = pneg %p226
        %p408 = pneg %p250
        %p409 = pneg %p247
        %p410 = pneg %p276
        %p411 = pneg %p273
        %s412 = sand.u32 %s263, 1
        %s413 = scalar_lea.sflag [#allocation5], %s412
        %s414 = sand.u32 %s263, 1
        %s415 = smul.addr %s414, 64
        %s416 = scalar_lea.vmem [#allocation6], %s415
        %s417 = smul.u32 8, %s25
        %p418 = scmp.lt.s32.totalorder %s417, 15
        %s419 = scalar_select %p418, %s417, 15
        %s420 = smul.addr %s419, 8
        %s421 = scalar_lea.vmem %s0, %s420
        %s422 = smul.u32 8, %s25
        %s423 = smul.u32 8, %s25
        %p424 = scmp.lt.s32.totalorder %s423, 15
        %s425 = scalar_select %p424, %s423, 15
        %s426 = smul.addr %s425, 8
        %s427 = scalar_lea.vmem %s5, %s426
        %s428 = smul.u32 8, %s25
        %s429 = smul.u32 8, %s25
        %p430 = scmp.lt.s32.totalorder %s429, 15
        %s431 = scalar_select %p430, %s429, 15
        %s432 = smul.addr %s431, 8
        %s433 = scalar_lea.vmem %s6, %s432
        %s434 = smul.u32 8, %s25
        %s435 = smul.u32 8, %s25
        %p436 = scmp.lt.s32.totalorder %s435, 15
        %s437 = scalar_select %p436, %s435, 15
        %s438 = smul.addr %s437, 8
        %s439 = scalar_lea.vmem %s7, %s438
        %s440 = smul.u32 8, %s25
        %s441 = smul.u32 8, %s25
        %v442 = vld [vmem:[%s421] sm:$0xff]
        %v443 = vld [vmem:[%s421 + $0x8] sm:$0xff]
        %v444 = vld [vmem:[%s421 + $0x10] sm:$0xff]
        %v445 = vld [vmem:[%s421 + $0x18] sm:$0xff]
        %v446 = vld [vmem:[%s421 + $0x20] sm:$0xff]
        %v447 = vld [vmem:[%s421 + $0x28] sm:$0xff]
        %v448 = vld [vmem:[%s421 + $0x30] sm:$0xff]
        %v449 = vld [vmem:[%s421 + $0x38] sm:$0xff]
        %v450 = vld [vmem:[%s1] sm:$0xff]
        %v451 = vld [vmem:[%s1 + $0x8] sm:$0xff]
        %v452 = vld [vmem:[%s1 + $0x10] sm:$0xff]
        %v453 = vld [vmem:[%s1 + $0x18] sm:$0xff]
        %v454 = vld [vmem:[%s1 + $0x20] sm:$0xff]
        %v455 = vld [vmem:[%s1 + $0x28] sm:$0xff]
        %v456 = vld [vmem:[%s1 + $0x30] sm:$0xff]
        %v457 = vld [vmem:[%s1 + $0x38] sm:$0xff]
        %v458 = vld [vmem:[%s1 + $0x40] sm:$0xff]
        %v459 = vld [vmem:[%s1 + $0x48] sm:$0xff]
        %v460 = vld [vmem:[%s1 + $0x50] sm:$0xff]
        %v461 = vld [vmem:[%s1 + $0x58] sm:$0xff]
        %v462 = vld [vmem:[%s1 + $0x60] sm:$0xff]
        %v463 = vld [vmem:[%s1 + $0x68] sm:$0xff]
        %v464 = vld [vmem:[%s1 + $0x70] sm:$0xff]
        %v465 = vld [vmem:[%s1 + $0x78] sm:$0xff]
        %v466 = vld [vmem:[%s2] sm:$0x1]
        %v468 = vlaneseq
        %v469 = vshrl.u32 %v468, 7
        %v470 = vsub.s32 0, %v469
        %v471 = vrot.slane %v466, %v470
        %473 = vmatprep.subr.mxu0 0.0
        %474 = vmatpush1.msra.mxu0 %v450
        %475 = vmatprep.subr.mxu0 0.0
        %476 = vmatpush1.msra.mxu0 %v451
        %477 = vmatprep.subr.mxu0 0.0
        %478 = vmatpush1.msra.mxu0 %v452
        %479 = vmatprep.subr.mxu0 0.0
        %480 = vmatpush1.msra.mxu0 %v453
        %481 = vmatprep.subr.mxu0 0.0
        %482 = vmatpush1.msra.mxu0 %v454
        %483 = vmatprep.subr.mxu0 0.0
        %484 = vmatpush1.msra.mxu0 %v455
        %485 = vmatprep.subr.mxu0 0.0
        %486 = vmatpush1.msra.mxu0 %v456
        %487 = vmatprep.subr.mxu0 0.0
        %488 = vmatpush1.msra.mxu0 %v457
        %489 = vmatprep.subr.mxu0 0.0
        %490 = vmatpush1.msra.mxu0 %v458
        %491 = vmatprep.subr.mxu0 0.0
        %492 = vmatpush1.msra.mxu0 %v459
        %493 = vmatprep.subr.mxu0 0.0
        %494 = vmatpush1.msra.mxu0 %v460
        %495 = vmatprep.subr.mxu0 0.0
        %496 = vmatpush1.msra.mxu0 %v461
        %497 = vmatprep.subr.mxu0 0.0
        %498 = vmatpush1.msra.mxu0 %v462
        %499 = vmatprep.subr.mxu0 0.0
        %500 = vmatpush1.msra.mxu0 %v463
        %501 = vmatprep.subr.mxu0 0.0
        %502 = vmatpush1.msra.mxu0 %v464
        %503 = vmatprep.subr.mxu0 0.0
        %504 = vmatpush1.msra.mxu0 %v465
        %505 = vmatprep.subr.mxu0 0.0
        %506 = vmatpush1.msra.mxu0 0.0
        %507 = vmatprep.subr.mxu0 0.0
        %508 = vmatpush1.msra.mxu0 0.0
        %509 = vmatprep.subr.mxu0 0.0
        %510 = vmatpush1.msra.mxu0 0.0
        %511 = vmatprep.subr.mxu0 0.0
        %512 = vmatpush1.msra.mxu0 0.0
        %513 = vmatprep.subr.mxu0 0.0
        %514 = vmatpush1.msra.mxu0 0.0
        %515 = vmatprep.subr.mxu0 0.0
        %516 = vmatpush1.msra.mxu0 0.0
        %517 = vmatprep.subr.mxu0 0.0
        %518 = vmatpush1.msra.mxu0 0.0
        %519 = vmatprep.subr.mxu0 0.0
        %520 = vmatpush1.msra.mxu0 0.0
        %521 = vmatprep.subr.mxu0 0.0
        %522 = vmatpush1.msra.mxu0 0.0
        %523 = vmatprep.subr.mxu0 0.0
        %524 = vmatpush1.msra.mxu0 0.0
        %525 = vmatprep.subr.mxu0 0.0
        %526 = vmatpush1.msra.mxu0 0.0
        %527 = vmatprep.subr.mxu0 0.0
        %528 = vmatpush1.msra.mxu0 0.0
        %529 = vmatprep.subr.mxu0 0.0
        %530 = vmatpush1.msra.mxu0 0.0
        %531 = vmatprep.subr.mxu0 0.0
        %532 = vmatpush1.msra.mxu0 0.0
        %533 = vmatprep.subr.mxu0 0.0
        %534 = vmatpush1.msra.mxu0 0.0
        %535 = vmatprep.subr.mxu0 0.0
        %536 = vmatpush1.msra.mxu0 0.0
        %537 = vmatprep.mubr.f32.mxu0 0.0
        %538 = vmatmul.mubr.f32.gmra.mrb[0].mxu0 %v442
        %v539 = vpop.f32.mrb[0].mxu0
        %v540 = vadd.f32 %v471, %v539
        %v541 = vpop.f32.mrb[0].mxu0
        %542 = vmatprep.mubr.f32.mxu0 0.0
        %543 = vmatmul.mubr.f32.gmra.mrb[0].mxu0 %v443
        %v544 = vpop.f32.mrb[0].mxu0
        %v545 = vadd.f32 %v471, %v544
        %v546 = vpop.f32.mrb[0].mxu0
        %547 = vmatprep.mubr.f32.mxu0 0.0
        %548 = vmatmul.mubr.f32.gmra.mrb[0].mxu0 %v444
        %v549 = vpop.f32.mrb[0].mxu0
        %v550 = vadd.f32 %v471, %v549
        %v551 = vpop.f32.mrb[0].mxu0
        %552 = vmatprep.mubr.f32.mxu0 0.0
        %553 = vmatmul.mubr.f32.gmra.mrb[0].mxu0 %v445
        %v554 = vpop.f32.mrb[0].mxu0
        %v555 = vadd.f32 %v471, %v554
        %v556 = vpop.f32.mrb[0].mxu0
        %557 = vmatprep.mubr.f32.mxu0 0.0
        %558 = vmatmul.mubr.f32.gmra.mrb[0].mxu0 %v446
        %v559 = vpop.f32.mrb[0].mxu0
        %v560 = vadd.f32 %v471, %v559
        %v561 = vpop.f32.mrb[0].mxu0
        %562 = vmatprep.mubr.f32.mxu0 0.0
        %563 = vmatmul.mubr.f32.gmra.mrb[0].mxu0 %v447
        %v564 = vpop.f32.mrb[0].mxu0
        %v565 = vadd.f32 %v471, %v564
        %v566 = vpop.f32.mrb[0].mxu0
        %567 = vmatprep.mubr.f32.mxu0 0.0
        %568 = vmatmul.mubr.f32.gmra.mrb[0].mxu0 %v448
        %v569 = vpop.f32.mrb[0].mxu0
        %v570 = vadd.f32 %v471, %v569
        %v571 = vpop.f32.mrb[0].mxu0
        %572 = vmatprep.mubr.f32.mxu0 0.0
        %573 = vmatmul.mubr.f32.gmra.mrb[0].mxu0 %v449
        %v574 = vpop.f32.mrb[0].mxu0
        %v575 = vadd.f32 %v471, %v574
        %v576 = vpop.f32.mrb[0].mxu0
        %577 = vdwg.mxu0
        %v578 = vmax.f32 %v540, 0.0
        %v579 = vmax.f32 %v545, 0.0
        %v580 = vmax.f32 %v550, 0.0
        %v581 = vmax.f32 %v555, 0.0
        %v582 = vmax.f32 %v560, 0.0
        %v583 = vmax.f32 %v565, 0.0
        %v584 = vmax.f32 %v570, 0.0
        %v585 = vmax.f32 %v575, 0.0
        %586 = vst [vmem:[#allocation2] sm:$0xff] %v578
        %587 = vst [vmem:[#allocation2 + $0x8] sm:$0xff] %v579
        %588 = vst [vmem:[#allocation2 + $0x10] sm:$0xff] %v580
        %589 = vst [vmem:[#allocation2 + $0x18] sm:$0xff] %v581
        %590 = vst [vmem:[#allocation2 + $0x20] sm:$0xff] %v582
        %591 = vst [vmem:[#allocation2 + $0x28] sm:$0xff] %v583
        %592 = vst [vmem:[#allocation2 + $0x30] sm:$0xff] %v584
        %593 = vst [vmem:[#allocation2 + $0x38] sm:$0xff] %v585
        %v594 = vld [vmem:[%s427] sm:$0xff]
        %v595 = vld [vmem:[%s427 + $0x8] sm:$0xff]
        %v596 = vld [vmem:[%s427 + $0x10] sm:$0xff]
        %v597 = vld [vmem:[%s427 + $0x18] sm:$0xff]
        %v598 = vld [vmem:[%s427 + $0x20] sm:$0xff]
        %v599 = vld [vmem:[%s427 + $0x28] sm:$0xff]
        %v600 = vld [vmem:[%s427 + $0x30] sm:$0xff]
        %v601 = vld [vmem:[%s427 + $0x38] sm:$0xff]
        %v602 = vld [vmem:[%s433] sm:$0xff]
        %v603 = vld [vmem:[%s433 + $0x8] sm:$0xff]
        %v604 = vld [vmem:[%s433 + $0x10] sm:$0xff]
        %v605 = vld [vmem:[%s433 + $0x18] sm:$0xff]
        %v606 = vld [vmem:[%s433 + $0x20] sm:$0xff]
        %v607 = vld [vmem:[%s433 + $0x28] sm:$0xff]
        %v608 = vld [vmem:[%s433 + $0x30] sm:$0xff]
        %v609 = vld [vmem:[%s433 + $0x38] sm:$0xff]
        %vm610 = vcmp.ge.s32.totalorder %v594, 1
        %vm611 = vcmp.ge.s32.totalorder %v595, 1
        %vm612 = vcmp.ge.s32.totalorder %v596, 1
        %vm613 = vcmp.ge.s32.totalorder %v597, 1
        %vm614 = vcmp.ge.s32.totalorder %v598, 1
        %vm615 = vcmp.ge.s32.totalorder %v599, 1
        %vm616 = vcmp.ge.s32.totalorder %v600, 1
        %vm617 = vcmp.ge.s32.totalorder %v601, 1
        %vm618 = vcmp.lt.s32.totalorder %v594, 7
        %vm619 = vcmp.lt.s32.totalorder %v595, 7
        %vm620 = vcmp.lt.s32.totalorder %v596, 7
        %vm621 = vcmp.lt.s32.totalorder %v597, 7
        %vm622 = vcmp.lt.s32.totalorder %v598, 7
        %vm623 = vcmp.lt.s32.totalorder %v599, 7
        %vm624 = vcmp.lt.s32.totalorder %v600, 7
        %vm625 = vcmp.lt.s32.totalorder %v601, 7
        %vm626 = vcmp.ge.s32.totalorder %v602, 1
        %vm627 = vcmp.ge.s32.totalorder %v603, 1
        %vm628 = vcmp.ge.s32.totalorder %v604, 1
        %vm629 = vcmp.ge.s32.totalorder %v605, 1
        %vm630 = vcmp.ge.s32.totalorder %v606, 1
        %vm631 = vcmp.ge.s32.totalorder %v607, 1
        %vm632 = vcmp.ge.s32.totalorder %v608, 1
        %vm633 = vcmp.ge.s32.totalorder %v609, 1
        %vm634 = vcmp.lt.s32.totalorder %v602, 7
        %vm635 = vcmp.lt.s32.totalorder %v603, 7
        %vm636 = vcmp.lt.s32.totalorder %v604, 7
        %vm637 = vcmp.lt.s32.totalorder %v605, 7
        %vm638 = vcmp.lt.s32.totalorder %v606, 7
        %vm639 = vcmp.lt.s32.totalorder %v607, 7
        %vm640 = vcmp.lt.s32.totalorder %v608, 7
        %vm641 = vcmp.lt.s32.totalorder %v609, 7
        %v642 = vld [vmem:[#allocation2] sm:$0xff]
        %v643 = vld [vmem:[#allocation2 + $0x8] sm:$0xff]
        %v644 = vld [vmem:[#allocation2 + $0x10] sm:$0xff]
        %v645 = vld [vmem:[#allocation2 + $0x18] sm:$0xff]
        %v646 = vld [vmem:[#allocation2 + $0x20] sm:$0xff]
        %v647 = vld [vmem:[#allocation2 + $0x28] sm:$0xff]
        %v648 = vld [vmem:[#allocation2 + $0x30] sm:$0xff]
        %v649 = vld [vmem:[#allocation2 + $0x38] sm:$0xff]
        %v650 = vrot.slane %v642, 7
        %v651 = vrot.slane %v643, 7
        %v652 = vrot.slane %v644, 7
        %v653 = vrot.slane %v645, 7
        %v654 = vrot.slane %v646, 7
        %v655 = vrot.slane %v647, 7
        %v656 = vrot.slane %v648, 7
        %v657 = vrot.slane %v649, 7
        %v658 = vlaneseq
        %v659 = vshrl.u32 %v658, 7
        %vm660 = vcmp.lt.s32.totalorder %v659, 1
        %v661 = vsel %vm660, %v656, %v657
        %v662 = vsel %vm660, %v655, %v656
        %v663 = vsel %vm660, %v654, %v655
        %v664 = vsel %vm660, %v653, %v654
        %v665 = vsel %vm660, %v652, %v653
        %v666 = vsel %vm660, %v651, %v652
        %v667 = vsel %vm660, %v650, %v651
        %v668 = vsel %vm660, %v657, %v650
        %vm669 = vmand %vm610, %vm626
        %vm670 = vmand %vm611, %vm627
        %vm671 = vmand %vm612, %vm628
        %vm672 = vmand %vm613, %vm629
        %vm673 = vmand %vm614, %vm630
        %vm674 = vmand %vm615, %vm631
        %vm675 = vmand %vm616, %vm632
        %vm676 = vmand %vm617, %vm633
        %v677 = vsel %vm669, 1, 0
        %v678 = vsel %vm670, 1, 0
        %v679 = vsel %vm671, 1, 0
        %v680 = vsel %vm672, 1, 0
        %v681 = vsel %vm673, 1, 0
        %v682 = vsel %vm674, 1, 0
        %v683 = vsel %vm675, 1, 0
        %v684 = vsel %vm676, 1, 0
        %685 = vset.pattern.permute.xlu0 0
        %686 = vperm.xlu0 %685, %v677
        %v687 = vpop.permute.xlu0 %686
        %688 = vset.pattern.permute.xlu0 0
        %689 = vperm.xlu0 %688, %v678
        %v690 = vpop.permute.xlu0 %689
        %691 = vset.pattern.permute.xlu0 0
        %692 = vperm.xlu0 %691, %v679
        %v693 = vpop.permute.xlu0 %692
        %694 = vset.pattern.permute.xlu0 0
        %695 = vperm.xlu0 %694, %v680
        %v696 = vpop.permute.xlu0 %695
        %697 = vset.pattern.permute.xlu0 0
        %698 = vperm.xlu0 %697, %v681
        %v699 = vpop.permute.xlu0 %698
        %700 = vset.pattern.permute.xlu0 0
        %701 = vperm.xlu0 %700, %v682
        %v702 = vpop.permute.xlu0 %701
        %703 = vset.pattern.permute.xlu0 0
        %704 = vperm.xlu0 %703, %v683
        %v705 = vpop.permute.xlu0 %704
        %706 = vset.pattern.permute.xlu0 0
        %707 = vperm.xlu0 %706, %v684
        %v708 = vpop.permute.xlu0 %707
        %vm709 = vcmp.eq.s32.totalorder %v687, 1
        %vm710 = vcmp.eq.s32.totalorder %v690, 1
        %vm711 = vcmp.eq.s32.totalorder %v693, 1
        %vm712 = vcmp.eq.s32.totalorder %v696, 1
        %vm713 = vcmp.eq.s32.totalorder %v699, 1
        %vm714 = vcmp.eq.s32.totalorder %v702, 1
        %vm715 = vcmp.eq.s32.totalorder %v705, 1
        %vm716 = vcmp.eq.s32.totalorder %v708, 1
        %v717 = vsel %vm709, %v661, 0.0
        %v718 = vsel %vm710, %v668, 0.0
        %v719 = vsel %vm711, %v667, 0.0
        %v720 = vsel %vm712, %v666, 0.0
        %v721 = vsel %vm713, %v665, 0.0
        %v722 = vsel %vm714, %v664, 0.0
        %v723 = vsel %vm715, %v663, 0.0
        %v724 = vsel %vm716, %v662, 0.0
        %v725 = vld [vmem:[#allocation3] sm:$0xff]
        %v726 = vld [vmem:[#allocation3 + $0x8] sm:$0xff]
        %v727 = vld [vmem:[#allocation3 + $0x10] sm:$0xff]
        %v728 = vld [vmem:[#allocation3 + $0x18] sm:$0xff]
        %v729 = vld [vmem:[#allocation3 + $0x20] sm:$0xff]
        %v730 = vld [vmem:[#allocation3 + $0x28] sm:$0xff]
        %v731 = vld [vmem:[#allocation3 + $0x30] sm:$0xff]
        %v732 = vld [vmem:[#allocation3 + $0x38] sm:$0xff]
        %v733 = vld [vmem:[#allocation3 + $0x40] sm:$0xff]
        %v734 = vld [vmem:[#allocation3 + $0x48] sm:$0xff]
        %v735 = vld [vmem:[#allocation3 + $0x50] sm:$0xff]
        %v736 = vld [vmem:[#allocation3 + $0x58] sm:$0xff]
        %v737 = vld [vmem:[#allocation3 + $0x60] sm:$0xff]
        %v738 = vld [vmem:[#allocation3 + $0x68] sm:$0xff]
        %v739 = vld [vmem:[#allocation3 + $0x70] sm:$0xff]
        %v740 = vld [vmem:[#allocation3 + $0x78] sm:$0xff]
        %v741 = vsel %vm610, 1, 0
        %v742 = vsel %vm611, 1, 0
        %v743 = vsel %vm612, 1, 0
        %v744 = vsel %vm613, 1, 0
        %v745 = vsel %vm614, 1, 0
        %v746 = vsel %vm615, 1, 0
        %v747 = vsel %vm616, 1, 0
        %v748 = vsel %vm617, 1, 0
        %749 = vset.pattern.permute.xlu0 0
        %750 = vperm.xlu0 %749, %v741
        %v751 = vpop.permute.xlu0 %750
        %752 = vset.pattern.permute.xlu0 0
        %753 = vperm.xlu0 %752, %v742
        %v754 = vpop.permute.xlu0 %753
        %755 = vset.pattern.permute.xlu0 0
        %756 = vperm.xlu0 %755, %v743
        %v757 = vpop.permute.xlu0 %756
        %758 = vset.pattern.permute.xlu0 0
        %759 = vperm.xlu0 %758, %v744
        %v760 = vpop.permute.xlu0 %759
        %761 = vset.pattern.permute.xlu0 0
        %762 = vperm.xlu0 %761, %v745
        %v763 = vpop.permute.xlu0 %762
        %764 = vset.pattern.permute.xlu0 0
        %765 = vperm.xlu0 %764, %v746
        %v766 = vpop.permute.xlu0 %765
        %767 = vset.pattern.permute.xlu0 0
        %768 = vperm.xlu0 %767, %v747
        %v769 = vpop.permute.xlu0 %768
        %770 = vset.pattern.permute.xlu0 0
        %771 = vperm.xlu0 %770, %v748
        %v772 = vpop.permute.xlu0 %771
        %vm773 = vcmp.eq.s32.totalorder %v751, 1
        %vm774 = vcmp.eq.s32.totalorder %v754, 1
        %vm775 = vcmp.eq.s32.totalorder %v757, 1
        %vm776 = vcmp.eq.s32.totalorder %v760, 1
        %vm777 = vcmp.eq.s32.totalorder %v763, 1
        %vm778 = vcmp.eq.s32.totalorder %v766, 1
        %vm779 = vcmp.eq.s32.totalorder %v769, 1
        %vm780 = vcmp.eq.s32.totalorder %v772, 1
        %v781 = vsel %vm773, %v649, 0.0
        %v782 = vsel %vm774, %v642, 0.0
        %v783 = vsel %vm775, %v643, 0.0
        %v784 = vsel %vm776, %v644, 0.0
        %v785 = vsel %vm777, %v645, 0.0
        %v786 = vsel %vm778, %v646, 0.0
        %v787 = vsel %vm779, %v647, 0.0
        %v788 = vsel %vm780, %v648, 0.0
        %s789 = scalar_lea.vmem [#allocation3], 128
        %v790 = vld [vmem:[%s789] sm:$0xff]
        %v791 = vld [vmem:[%s789 + $0x8] sm:$0xff]
        %v792 = vld [vmem:[%s789 + $0x10] sm:$0xff]
        %v793 = vld [vmem:[%s789 + $0x18] sm:$0xff]
        %v794 = vld [vmem:[%s789 + $0x20] sm:$0xff]
        %v795 = vld [vmem:[%s789 + $0x28] sm:$0xff]
        %v796 = vld [vmem:[%s789 + $0x30] sm:$0xff]
        %v797 = vld [vmem:[%s789 + $0x38] sm:$0xff]
        %v798 = vld [vmem:[%s789 + $0x40] sm:$0xff]
        %v799 = vld [vmem:[%s789 + $0x48] sm:$0xff]
        %v800 = vld [vmem:[%s789 + $0x50] sm:$0xff]
        %v801 = vld [vmem:[%s789 + $0x58] sm:$0xff]
        %v802 = vld [vmem:[%s789 + $0x60] sm:$0xff]
        %v803 = vld [vmem:[%s789 + $0x68] sm:$0xff]
        %v804 = vld [vmem:[%s789 + $0x70] sm:$0xff]
        %v805 = vld [vmem:[%s789 + $0x78] sm:$0xff]
        %806 = vmatprep.subr.mxu0 0.0
        %807 = vmatpush1.msra.mxu0 %v790
        %808 = vmatprep.subr.mxu0 0.0
        %809 = vmatpush1.msra.mxu0 %v791
        %810 = vmatprep.subr.mxu0 0.0
        %811 = vmatpush1.msra.mxu0 %v792
        %812 = vmatprep.subr.mxu0 0.0
        %813 = vmatpush1.msra.mxu0 %v793
        %814 = vmatprep.subr.mxu0 0.0
        %815 = vmatpush1.msra.mxu0 %v794
        %816 = vmatprep.subr.mxu0 0.0
        %817 = vmatpush1.msra.mxu0 %v795
        %818 = vmatprep.subr.mxu0 0.0
        %819 = vmatpush1.msra.mxu0 %v796
        %820 = vmatprep.subr.mxu0 0.0
        %821 = vmatpush1.msra.mxu0 %v797
        %822 = vmatprep.subr.mxu0 0.0
        %823 = vmatpush1.msra.mxu0 %v798
        %824 = vmatprep.subr.mxu0 0.0
        %825 = vmatpush1.msra.mxu0 %v799
        %826 = vmatprep.subr.mxu0 0.0
        %827 = vmatpush1.msra.mxu0 %v800
        %828 = vmatprep.subr.mxu0 0.0
        %829 = vmatpush1.msra.mxu0 %v801
        %830 = vmatprep.subr.mxu0 0.0
        %831 = vmatpush1.msra.mxu0 %v802
        %832 = vmatprep.subr.mxu0 0.0
        %833 = vmatpush1.msra.mxu0 %v803
        %834 = vmatprep.subr.mxu0 0.0
        %835 = vmatpush1.msra.mxu0 %v804
        %836 = vmatprep.subr.mxu0 0.0
        %837 = vmatpush1.msra.mxu0 %v805
        %838 = vmatprep.subr.mxu0 0.0
        %839 = vmatpush1.msra.mxu0 0.0
        %840 = vmatprep.subr.mxu0 0.0
        %841 = vmatpush1.msra.mxu0 0.0
        %842 = vmatprep.subr.mxu0 0.0
        %843 = vmatpush1.msra.mxu0 0.0
        %844 = vmatprep.subr.mxu0 0.0
        %845 = vmatpush1.msra.mxu0 0.0
        %846 = vmatprep.subr.mxu0 0.0
        %847 = vmatpush1.msra.mxu0 0.0
        %848 = vmatprep.subr.mxu0 0.0
        %849 = vmatpush1.msra.mxu0 0.0
        %850 = vmatprep.subr.mxu0 0.0
        %851 = vmatpush1.msra.mxu0 0.0
        %852 = vmatprep.subr.mxu0 0.0
        %853 = vmatpush1.msra.mxu0 0.0
        %854 = vmatprep.subr.mxu0 0.0
        %855 = vmatpush1.msra.mxu0 0.0
        %856 = vmatprep.subr.mxu0 0.0
        %857 = vmatpush1.msra.mxu0 0.0
        %858 = vmatprep.subr.mxu0 0.0
        %859 = vmatpush1.msra.mxu0 0.0
        %860 = vmatprep.subr.mxu0 0.0
        %861 = vmatpush1.msra.mxu0 0.0
        %862 = vmatprep.subr.mxu0 0.0
        %863 = vmatpush1.msra.mxu0 0.0
        %864 = vmatprep.subr.mxu0 0.0
        %865 = vmatpush1.msra.mxu0 0.0
        %866 = vmatprep.subr.mxu0 0.0
        %867 = vmatpush1.msra.mxu0 0.0
        %868 = vmatprep.subr.mxu0 0.0
        %869 = vmatpush1.msra.mxu0 0.0
        %870 = vmatprep.mubr.f32.mxu0 0.0
        %871 = vmatmul.mubr.f32.gmra.mrb[0].mxu0 %v781
        %v872 = vpop.f32.mrb[0].mxu0
        %v873 = vadd.f32 0.0, %v872
        %v874 = vpop.f32.mrb[0].mxu0
        %875 = vmatprep.mubr.f32.mxu0 0.0
        %876 = vmatmul.mubr.f32.gmra.mrb[0].mxu0 %v782
        %v877 = vpop.f32.mrb[0].mxu0
        %v878 = vadd.f32 0.0, %v877
        %v879 = vpop.f32.mrb[0].mxu0
        %880 = vmatprep.mubr.f32.mxu0 0.0
        %881 = vmatmul.mubr.f32.gmra.mrb[0].mxu0 %v783
        %v882 = vpop.f32.mrb[0].mxu0
        %v883 = vadd.f32 0.0, %v882
        %v884 = vpop.f32.mrb[0].mxu0
        %885 = vmatprep.mubr.f32.mxu0 0.0
        %886 = vmatmul.mubr.f32.gmra.mrb[0].mxu0 %v784
        %v887 = vpop.f32.mrb[0].mxu0
        %v888 = vadd.f32 0.0, %v887
        %v889 = vpop.f32.mrb[0].mxu0
        %890 = vmatprep.mubr.f32.mxu0 0.0
        %891 = vmatmul.mubr.f32.gmra.mrb[0].mxu0 %v785
        %v892 = vpop.f32.mrb[0].mxu0
        %v893 = vadd.f32 0.0, %v892
        %v894 = vpop.f32.mrb[0].mxu0
        %895 = vmatprep.mubr.f32.mxu0 0.0
        %896 = vmatmul.mubr.f32.gmra.mrb[0].mxu0 %v786
        %v897 = vpop.f32.mrb[0].mxu0
        %v898 = vadd.f32 0.0, %v897
        %v899 = vpop.f32.mrb[0].mxu0
        %900 = vmatprep.mubr.f32.mxu0 0.0
        %901 = vmatmul.mubr.f32.gmra.mrb[0].mxu0 %v787
        %v902 = vpop.f32.mrb[0].mxu0
        %v903 = vadd.f32 0.0, %v902
        %v904 = vpop.f32.mrb[0].mxu0
        %905 = vmatprep.mubr.f32.mxu0 0.0
        %906 = vmatmul.mubr.f32.gmra.mrb[0].mxu0 %v788
        %v907 = vpop.f32.mrb[0].mxu0
        %v908 = vadd.f32 0.0, %v907
        %v909 = vpop.f32.mrb[0].mxu0
        %910 = vdwg.mxu0
        %911 = vmatprep.subr.mxu0 0.0
        %912 = vmatpush1.msra.mxu0 %v725
        %913 = vmatprep.subr.mxu0 0.0
        %914 = vmatpush1.msra.mxu0 %v726
        %915 = vmatprep.subr.mxu0 0.0
        %916 = vmatpush1.msra.mxu0 %v727
        %917 = vmatprep.subr.mxu0 0.0
        %918 = vmatpush1.msra.mxu0 %v728
        %919 = vmatprep.subr.mxu0 0.0
        %920 = vmatpush1.msra.mxu0 %v729
        %921 = vmatprep.subr.mxu0 0.0
        %922 = vmatpush1.msra.mxu0 %v730
        %923 = vmatprep.subr.mxu0 0.0
        %924 = vmatpush1.msra.mxu0 %v731
        %925 = vmatprep.subr.mxu0 0.0
        %926 = vmatpush1.msra.mxu0 %v732
        %927 = vmatprep.subr.mxu0 0.0
        %928 = vmatpush1.msra.mxu0 %v733
        %929 = vmatprep.subr.mxu0 0.0
        %930 = vmatpush1.msra.mxu0 %v734
        %931 = vmatprep.subr.mxu0 0.0
        %932 = vmatpush1.msra.mxu0 %v735
        %933 = vmatprep.subr.mxu0 0.0
        %934 = vmatpush1.msra.mxu0 %v736
        %935 = vmatprep.subr.mxu0 0.0
        %936 = vmatpush1.msra.mxu0 %v737
        %937 = vmatprep.subr.mxu0 0.0
        %938 = vmatpush1.msra.mxu0 %v738
        %939 = vmatprep.subr.mxu0 0.0
        %940 = vmatpush1.msra.mxu0 %v739
        %941 = vmatprep.subr.mxu0 0.0
        %942 = vmatpush1.msra.mxu0 %v740
        %943 = vmatprep.subr.mxu0 0.0
        %944 = vmatpush1.msra.mxu0 0.0
        %945 = vmatprep.subr.mxu0 0.0
        %946 = vmatpush1.msra.mxu0 0.0
        %947 = vmatprep.subr.mxu0 0.0
        %948 = vmatpush1.msra.mxu0 0.0
        %949 = vmatprep.subr.mxu0 0.0
        %950 = vmatpush1.msra.mxu0 0.0
        %951 = vmatprep.subr.mxu0 0.0
        %952 = vmatpush1.msra.mxu0 0.0
        %953 = vmatprep.subr.mxu0 0.0
        %954 = vmatpush1.msra.mxu0 0.0
        %955 = vmatprep.subr.mxu0 0.0
        %956 = vmatpush1.msra.mxu0 0.0
        %957 = vmatprep.subr.mxu0 0.0
        %958 = vmatpush1.msra.mxu0 0.0
        %959 = vmatprep.subr.mxu0 0.0
        %960 = vmatpush1.msra.mxu0 0.0
        %961 = vmatprep.subr.mxu0 0.0
        %962 = vmatpush1.msra.mxu0 0.0
        %963 = vmatprep.subr.mxu0 0.0
        %964 = vmatpush1.msra.mxu0 0.0
        %965 = vmatprep.subr.mxu0 0.0
        %966 = vmatpush1.msra.mxu0 0.0
        %967 = vmatprep.subr.mxu0 0.0
        %968 = vmatpush1.msra.mxu0 0.0
        %969 = vmatprep.subr.mxu0 0.0
        %970 = vmatpush1.msra.mxu0 0.0
        %971 = vmatprep.subr.mxu0 0.0
        %972 = vmatpush1.msra.mxu0 0.0
        %973 = vmatprep.subr.mxu0 0.0
        %974 = vmatpush1.msra.mxu0 0.0
        %975 = vmatprep.mubr.f32.mxu0 0.0
        %976 = vmatmul.mubr.f32.gmra.mrb[0].mxu0 %v717
        %v977 = vpop.f32.mrb[0].mxu0
        %v978 = vadd.f32 %v873, %v977
        %v979 = vpop.f32.mrb[0].mxu0
        %980 = vmatprep.mubr.f32.mxu0 0.0
        %981 = vmatmul.mubr.f32.gmra.mrb[0].mxu0 %v718
        %v982 = vpop.f32.mrb[0].mxu0
        %v983 = vadd.f32 %v878, %v982
        %v984 = vpop.f32.mrb[0].mxu0
        %985 = vmatprep.mubr.f32.mxu0 0.0
        %986 = vmatmul.mubr.f32.gmra.mrb[0].mxu0 %v719
        %v987 = vpop.f32.mrb[0].mxu0
        %v988 = vadd.f32 %v883, %v987
        %v989 = vpop.f32.mrb[0].mxu0
        %990 = vmatprep.mubr.f32.mxu0 0.0
        %991 = vmatmul.mubr.f32.gmra.mrb[0].mxu0 %v720
        %v992 = vpop.f32.mrb[0].mxu0
        %v993 = vadd.f32 %v888, %v992
        %v994 = vpop.f32.mrb[0].mxu0
        %995 = vmatprep.mubr.f32.mxu0 0.0
        %996 = vmatmul.mubr.f32.gmra.mrb[0].mxu0 %v721
        %v997 = vpop.f32.mrb[0].mxu0
        %v998 = vadd.f32 %v893, %v997
        %v999 = vpop.f32.mrb[0].mxu0
        %1000 = vmatprep.mubr.f32.mxu0 0.0
        %1001 = vmatmul.mubr.f32.gmra.mrb[0].mxu0 %v722
        %v1002 = vpop.f32.mrb[0].mxu0
        %v1003 = vadd.f32 %v898, %v1002
        %v1004 = vpop.f32.mrb[0].mxu0
        %1005 = vmatprep.mubr.f32.mxu0 0.0
        %1006 = vmatmul.mubr.f32.gmra.mrb[0].mxu0 %v723
        %v1007 = vpop.f32.mrb[0].mxu0
        %v1008 = vadd.f32 %v903, %v1007
        %v1009 = vpop.f32.mrb[0].mxu0
        %1010 = vmatprep.mubr.f32.mxu0 0.0
        %1011 = vmatmul.mubr.f32.gmra.mrb[0].mxu0 %v724
        %v1012 = vpop.f32.mrb[0].mxu0
        %v1013 = vadd.f32 %v908, %v1012
        %v1014 = vpop.f32.mrb[0].mxu0
        %1015 = vdwg.mxu0
        %v1016 = vrot.slane %v642, 1
        %v1017 = vrot.slane %v643, 1
        %v1018 = vrot.slane %v644, 1
        %v1019 = vrot.slane %v645, 1
        %v1020 = vrot.slane %v646, 1
        %v1021 = vrot.slane %v647, 1
        %v1022 = vrot.slane %v648, 1
        %v1023 = vrot.slane %v649, 1
        %vm1024 = vcmp.lt.s32.totalorder %v659, 7
        %v1025 = vsel %vm1024, %v1022, %v1023
        %v1026 = vsel %vm1024, %v1021, %v1022
        %v1027 = vsel %vm1024, %v1020, %v1021
        %v1028 = vsel %vm1024, %v1019, %v1020
        %v1029 = vsel %vm1024, %v1018, %v1019
        %v1030 = vsel %vm1024, %v1017, %v1018
        %v1031 = vsel %vm1024, %v1016, %v1017
        %v1032 = vsel %vm1024, %v1023, %v1016
        %vm1033 = vmand %vm610, %vm634
        %vm1034 = vmand %vm611, %vm635
        %vm1035 = vmand %vm612, %vm636
        %vm1036 = vmand %vm613, %vm637
        %vm1037 = vmand %vm614, %vm638
        %vm1038 = vmand %vm615, %vm639
        %vm1039 = vmand %vm616, %vm640
        %vm1040 = vmand %vm617, %vm641
        %v1041 = vsel %vm1033, 1, 0
        %v1042 = vsel %vm1034, 1, 0
        %v1043 = vsel %vm1035, 1, 0
        %v1044 = vsel %vm1036, 1, 0
        %v1045 = vsel %vm1037, 1, 0
        %v1046 = vsel %vm1038, 1, 0
        %v1047 = vsel %vm1039, 1, 0
        %v1048 = vsel %vm1040, 1, 0
        %1049 = vset.pattern.permute.xlu0 0
        %1050 = vperm.xlu0 %1049, %v1041
        %v1051 = vpop.permute.xlu0 %1050
        %1052 = vset.pattern.permute.xlu0 0
        %1053 = vperm.xlu0 %1052, %v1042
        %v1054 = vpop.permute.xlu0 %1053
        %1055 = vset.pattern.permute.xlu0 0
        %1056 = vperm.xlu0 %1055, %v1043
        %v1057 = vpop.permute.xlu0 %1056
        %1058 = vset.pattern.permute.xlu0 0
        %1059 = vperm.xlu0 %1058, %v1044
        %v1060 = vpop.permute.xlu0 %1059
        %1061 = vset.pattern.permute.xlu0 0
        %1062 = vperm.xlu0 %1061, %v1045
        %v1063 = vpop.permute.xlu0 %1062
        %1064 = vset.pattern.permute.xlu0 0
        %1065 = vperm.xlu0 %1064, %v1046
        %v1066 = vpop.permute.xlu0 %1065
        %1067 = vset.pattern.permute.xlu0 0
        %1068 = vperm.xlu0 %1067, %v1047
        %v1069 = vpop.permute.xlu0 %1068
        %1070 = vset.pattern.permute.xlu0 0
        %1071 = vperm.xlu0 %1070, %v1048
        %v1072 = vpop.permute.xlu0 %1071
        %vm1073 = vcmp.eq.s32.totalorder %v1051, 1
        %vm1074 = vcmp.eq.s32.totalorder %v1054, 1
        %vm1075 = vcmp.eq.s32.totalorder %v1057, 1
        %vm1076 = vcmp.eq.s32.totalorder %v1060, 1
        %vm1077 = vcmp.eq.s32.totalorder %v1063, 1
        %vm1078 = vcmp.eq.s32.totalorder %v1066, 1
        %vm1079 = vcmp.eq.s32.totalorder %v1069, 1
        %vm1080 = vcmp.eq.s32.totalorder %v1072, 1
        %v1081 = vsel %vm1073, %v1032, 0.0
        %v1082 = vsel %vm1074, %v1031, 0.0
        %v1083 = vsel %vm1075, %v1030, 0.0
        %v1084 = vsel %vm1076, %v1029, 0.0
        %v1085 = vsel %vm1077, %v1028, 0.0
        %v1086 = vsel %vm1078, %v1027, 0.0
        %v1087 = vsel %vm1079, %v1026, 0.0
        %v1088 = vsel %vm1080, %v1025, 0.0
        %s1089 = scalar_lea.vmem [#allocation3], 256
        %v1090 = vld [vmem:[%s1089] sm:$0xff]
        %v1091 = vld [vmem:[%s1089 + $0x8] sm:$0xff]
        %v1092 = vld [vmem:[%s1089 + $0x10] sm:$0xff]
        %v1093 = vld [vmem:[%s1089 + $0x18] sm:$0xff]
        %v1094 = vld [vmem:[%s1089 + $0x20] sm:$0xff]
        %v1095 = vld [vmem:[%s1089 + $0x28] sm:$0xff]
        %v1096 = vld [vmem:[%s1089 + $0x30] sm:$0xff]
        %v1097 = vld [vmem:[%s1089 + $0x38] sm:$0xff]
        %v1098 = vld [vmem:[%s1089 + $0x40] sm:$0xff]
        %v1099 = vld [vmem:[%s1089 + $0x48] sm:$0xff]
        %v1100 = vld [vmem:[%s1089 + $0x50] sm:$0xff]
        %v1101 = vld [vmem:[%s1089 + $0x58] sm:$0xff]
        %v1102 = vld [vmem:[%s1089 + $0x60] sm:$0xff]
        %v1103 = vld [vmem:[%s1089 + $0x68] sm:$0xff]
        %v1104 = vld [vmem:[%s1089 + $0x70] sm:$0xff]
        %v1105 = vld [vmem:[%s1089 + $0x78] sm:$0xff]
        %1106 = vmatprep.subr.mxu0 0.0
        %1107 = vmatpush1.msra.mxu0 %v1090
        %1108 = vmatprep.subr.mxu0 0.0
        %1109 = vmatpush1.msra.mxu0 %v1091
        %1110 = vmatprep.subr.mxu0 0.0
        %1111 = vmatpush1.msra.mxu0 %v1092
        %1112 = vmatprep.subr.mxu0 0.0
        %1113 = vmatpush1.msra.mxu0 %v1093
        %1114 = vmatprep.subr.mxu0 0.0
        %1115 = vmatpush1.msra.mxu0 %v1094
        %1116 = vmatprep.subr.mxu0 0.0
        %1117 = vmatpush1.msra.mxu0 %v1095
        %1118 = vmatprep.subr.mxu0 0.0
        %1119 = vmatpush1.msra.mxu0 %v1096
        %1120 = vmatprep.subr.mxu0 0.0
        %1121 = vmatpush1.msra.mxu0 %v1097
        %1122 = vmatprep.subr.mxu0 0.0
        %1123 = vmatpush1.msra.mxu0 %v1098
        %1124 = vmatprep.subr.mxu0 0.0
        %1125 = vmatpush1.msra.mxu0 %v1099
        %1126 = vmatprep.subr.mxu0 0.0
        %1127 = vmatpush1.msra.mxu0 %v1100
        %1128 = vmatprep.subr.mxu0 0.0
        %1129 = vmatpush1.msra.mxu0 %v1101
        %1130 = vmatprep.subr.mxu0 0.0
        %1131 = vmatpush1.msra.mxu0 %v1102
        %1132 = vmatprep.subr.mxu0 0.0
        %1133 = vmatpush1.msra.mxu0 %v1103
        %1134 = vmatprep.subr.mxu0 0.0
        %1135 = vmatpush1.msra.mxu0 %v1104
        %1136 = vmatprep.subr.mxu0 0.0
        %1137 = vmatpush1.msra.mxu0 %v1105
        %1138 = vmatprep.subr.mxu0 0.0
        %1139 = vmatpush1.msra.mxu0 0.0
        %1140 = vmatprep.subr.mxu0 0.0
        %1141 = vmatpush1.msra.mxu0 0.0
        %1142 = vmatprep.subr.mxu0 0.0
        %1143 = vmatpush1.msra.mxu0 0.0
        %1144 = vmatprep.subr.mxu0 0.0
        %1145 = vmatpush1.msra.mxu0 0.0
        %1146 = vmatprep.subr.mxu0 0.0
        %1147 = vmatpush1.msra.mxu0 0.0
        %1148 = vmatprep.subr.mxu0 0.0
        %1149 = vmatpush1.msra.mxu0 0.0
        %1150 = vmatprep.subr.mxu0 0.0
        %1151 = vmatpush1.msra.mxu0 0.0
        %1152 = vmatprep.subr.mxu0 0.0
        %1153 = vmatpush1.msra.mxu0 0.0
        %1154 = vmatprep.subr.mxu0 0.0
        %1155 = vmatpush1.msra.mxu0 0.0
        %1156 = vmatprep.subr.mxu0 0.0
        %1157 = vmatpush1.msra.mxu0 0.0
        %1158 = vmatprep.subr.mxu0 0.0
        %1159 = vmatpush1.msra.mxu0 0.0
        %1160 = vmatprep.subr.mxu0 0.0
        %1161 = vmatpush1.msra.mxu0 0.0
        %1162 = vmatprep.subr.mxu0 0.0
        %1163 = vmatpush1.msra.mxu0 0.0
        %1164 = vmatprep.subr.mxu0 0.0
        %1165 = vmatpush1.msra.mxu0 0.0
        %1166 = vmatprep.subr.mxu0 0.0
        %1167 = vmatpush1.msra.mxu0 0.0
        %1168 = vmatprep.subr.mxu0 0.0
        %1169 = vmatpush1.msra.mxu0 0.0
        %1170 = vmatprep.mubr.f32.mxu0 0.0
        %1171 = vmatmul.mubr.f32.gmra.mrb[0].mxu0 %v1081
        %v1172 = vpop.f32.mrb[0].mxu0
        %v1173 = vadd.f32 0.0, %v1172
        %v1174 = vpop.f32.mrb[0].mxu0
        %1175 = vmatprep.mubr.f32.mxu0 0.0
        %1176 = vmatmul.mubr.f32.gmra.mrb[0].mxu0 %v1082
        %v1177 = vpop.f32.mrb[0].mxu0
        %v1178 = vadd.f32 0.0, %v1177
        %v1179 = vpop.f32.mrb[0].mxu0
        %1180 = vmatprep.mubr.f32.mxu0 0.0
        %1181 = vmatmul.mubr.f32.gmra.mrb[0].mxu0 %v1083
        %v1182 = vpop.f32.mrb[0].mxu0
        %v1183 = vadd.f32 0.0, %v1182
        %v1184 = vpop.f32.mrb[0].mxu0
        %1185 = vmatprep.mubr.f32.mxu0 0.0
        %1186 = vmatmul.mubr.f32.gmra.mrb[0].mxu0 %v1084
        %v1187 = vpop.f32.mrb[0].mxu0
        %v1188 = vadd.f32 0.0, %v1187
        %v1189 = vpop.f32.mrb[0].mxu0
        %1190 = vmatprep.mubr.f32.mxu0 0.0
        %1191 = vmatmul.mubr.f32.gmra.mrb[0].mxu0 %v1085
        %v1192 = vpop.f32.mrb[0].mxu0
        %v1193 = vadd.f32 0.0, %v1192
        %v1194 = vpop.f32.mrb[0].mxu0
        %1195 = vmatprep.mubr.f32.mxu0 0.0
        %1196 = vmatmul.mubr.f32.gmra.mrb[0].mxu0 %v1086
        %v1197 = vpop.f32.mrb[0].mxu0
        %v1198 = vadd.f32 0.0, %v1197
        %v1199 = vpop.f32.mrb[0].mxu0
        %1200 = vmatprep.mubr.f32.mxu0 0.0
        %1201 = vmatmul.mubr.f32.gmra.mrb[0].mxu0 %v1087
        %v1202 = vpop.f32.mrb[0].mxu0
        %v1203 = vadd.f32 0.0, %v1202
        %v1204 = vpop.f32.mrb[0].mxu0
        %1205 = vmatprep.mubr.f32.mxu0 0.0
        %1206 = vmatmul.mubr.f32.gmra.mrb[0].mxu0 %v1088
        %v1207 = vpop.f32.mrb[0].mxu0
        %v1208 = vadd.f32 0.0, %v1207
        %v1209 = vpop.f32.mrb[0].mxu0
        %1210 = vdwg.mxu0
        %v1211 = vadd.f32 %v978, %v1173
        %v1212 = vadd.f32 %v983, %v1178
        %v1213 = vadd.f32 %v988, %v1183
        %v1214 = vadd.f32 %v993, %v1188
        %v1215 = vadd.f32 %v998, %v1193
        %v1216 = vadd.f32 %v1003, %v1198
        %v1217 = vadd.f32 %v1008, %v1203
        %v1218 = vadd.f32 %v1013, %v1208
        %v1219 = vsel %vm626, 1, 0
        %v1220 = vsel %vm627, 1, 0
        %v1221 = vsel %vm628, 1, 0
        %v1222 = vsel %vm629, 1, 0
        %v1223 = vsel %vm630, 1, 0
        %v1224 = vsel %vm631, 1, 0
        %v1225 = vsel %vm632, 1, 0
        %v1226 = vsel %vm633, 1, 0
        %1227 = vset.pattern.permute.xlu0 0
        %1228 = vperm.xlu0 %1227, %v1219
        %v1229 = vpop.permute.xlu0 %1228
        %1230 = vset.pattern.permute.xlu0 0
        %1231 = vperm.xlu0 %1230, %v1220
        %v1232 = vpop.permute.xlu0 %1231
        %1233 = vset.pattern.permute.xlu0 0
        %1234 = vperm.xlu0 %1233, %v1221
        %v1235 = vpop.permute.xlu0 %1234
        %1236 = vset.pattern.permute.xlu0 0
        %1237 = vperm.xlu0 %1236, %v1222
        %v1238 = vpop.permute.xlu0 %1237
        %1239 = vset.pattern.permute.xlu0 0
        %1240 = vperm.xlu0 %1239, %v1223
        %v1241 = vpop.permute.xlu0 %1240
        %1242 = vset.pattern.permute.xlu0 0
        %1243 = vperm.xlu0 %1242, %v1224
        %v1244 = vpop.permute.xlu0 %1243
        %1245 = vset.pattern.permute.xlu0 0
        %1246 = vperm.xlu0 %1245, %v1225
        %v1247 = vpop.permute.xlu0 %1246
        %1248 = vset.pattern.permute.xlu0 0
        %1249 = vperm.xlu0 %1248, %v1226
        %v1250 = vpop.permute.xlu0 %1249
        %vm1251 = vcmp.eq.s32.totalorder %v1229, 1
        %vm1252 = vcmp.eq.s32.totalorder %v1232, 1
        %vm1253 = vcmp.eq.s32.totalorder %v1235, 1
        %vm1254 = vcmp.eq.s32.totalorder %v1238, 1
        %vm1255 = vcmp.eq.s32.totalorder %v1241, 1
        %vm1256 = vcmp.eq.s32.totalorder %v1244, 1
        %vm1257 = vcmp.eq.s32.totalorder %v1247, 1
        %vm1258 = vcmp.eq.s32.totalorder %v1250, 1
        %v1259 = vsel %vm1251, %v668, 0.0
        %v1260 = vsel %vm1252, %v667, 0.0
        %v1261 = vsel %vm1253, %v666, 0.0
        %v1262 = vsel %vm1254, %v665, 0.0
        %v1263 = vsel %vm1255, %v664, 0.0
        %v1264 = vsel %vm1256, %v663, 0.0
        %v1265 = vsel %vm1257, %v662, 0.0
        %v1266 = vsel %vm1258, %v661, 0.0
        %s1267 = scalar_lea.vmem [#allocation3], 384
        %v1268 = vld [vmem:[%s1267] sm:$0xff]
        %v1269 = vld [vmem:[%s1267 + $0x8] sm:$0xff]
        %v1270 = vld [vmem:[%s1267 + $0x10] sm:$0xff]
        %v1271 = vld [vmem:[%s1267 + $0x18] sm:$0xff]
        %v1272 = vld [vmem:[%s1267 + $0x20] sm:$0xff]
        %v1273 = vld [vmem:[%s1267 + $0x28] sm:$0xff]
        %v1274 = vld [vmem:[%s1267 + $0x30] sm:$0xff]
        %v1275 = vld [vmem:[%s1267 + $0x38] sm:$0xff]
        %v1276 = vld [vmem:[%s1267 + $0x40] sm:$0xff]
        %v1277 = vld [vmem:[%s1267 + $0x48] sm:$0xff]
        %v1278 = vld [vmem:[%s1267 + $0x50] sm:$0xff]
        %v1279 = vld [vmem:[%s1267 + $0x58] sm:$0xff]
        %v1280 = vld [vmem:[%s1267 + $0x60] sm:$0xff]
        %v1281 = vld [vmem:[%s1267 + $0x68] sm:$0xff]
        %v1282 = vld [vmem:[%s1267 + $0x70] sm:$0xff]
        %v1283 = vld [vmem:[%s1267 + $0x78] sm:$0xff]
        %1284 = vmatprep.subr.mxu0 0.0
        %1285 = vmatpush1.msra.mxu0 %v1268
        %1286 = vmatprep.subr.mxu0 0.0
        %1287 = vmatpush1.msra.mxu0 %v1269
        %1288 = vmatprep.subr.mxu0 0.0
        %1289 = vmatpush1.msra.mxu0 %v1270
        %1290 = vmatprep.subr.mxu0 0.0
        %1291 = vmatpush1.msra.mxu0 %v1271
        %1292 = vmatprep.subr.mxu0 0.0
        %1293 = vmatpush1.msra.mxu0 %v1272
        %1294 = vmatprep.subr.mxu0 0.0
        %1295 = vmatpush1.msra.mxu0 %v1273
        %1296 = vmatprep.subr.mxu0 0.0
        %1297 = vmatpush1.msra.mxu0 %v1274
        %1298 = vmatprep.subr.mxu0 0.0
        %1299 = vmatpush1.msra.mxu0 %v1275
        %1300 = vmatprep.subr.mxu0 0.0
        %1301 = vmatpush1.msra.mxu0 %v1276
        %1302 = vmatprep.subr.mxu0 0.0
        %1303 = vmatpush1.msra.mxu0 %v1277
        %1304 = vmatprep.subr.mxu0 0.0
        %1305 = vmatpush1.msra.mxu0 %v1278
        %1306 = vmatprep.subr.mxu0 0.0
        %1307 = vmatpush1.msra.mxu0 %v1279
        %1308 = vmatprep.subr.mxu0 0.0
        %1309 = vmatpush1.msra.mxu0 %v1280
        %1310 = vmatprep.subr.mxu0 0.0
        %1311 = vmatpush1.msra.mxu0 %v1281
        %1312 = vmatprep.subr.mxu0 0.0
        %1313 = vmatpush1.msra.mxu0 %v1282
        %1314 = vmatprep.subr.mxu0 0.0
        %1315 = vmatpush1.msra.mxu0 %v1283
        %1316 = vmatprep.subr.mxu0 0.0
        %1317 = vmatpush1.msra.mxu0 0.0
        %1318 = vmatprep.subr.mxu0 0.0
        %1319 = vmatpush1.msra.mxu0 0.0
        %1320 = vmatprep.subr.mxu0 0.0
        %1321 = vmatpush1.msra.mxu0 0.0
        %1322 = vmatprep.subr.mxu0 0.0
        %1323 = vmatpush1.msra.mxu0 0.0
        %1324 = vmatprep.subr.mxu0 0.0
        %1325 = vmatpush1.msra.mxu0 0.0
        %1326 = vmatprep.subr.mxu0 0.0
        %1327 = vmatpush1.msra.mxu0 0.0
        %1328 = vmatprep.subr.mxu0 0.0
        %1329 = vmatpush1.msra.mxu0 0.0
        %1330 = vmatprep.subr.mxu0 0.0
        %1331 = vmatpush1.msra.mxu0 0.0
        %1332 = vmatprep.subr.mxu0 0.0
        %1333 = vmatpush1.msra.mxu0 0.0
        %1334 = vmatprep.subr.mxu0 0.0
        %1335 = vmatpush1.msra.mxu0 0.0
        %1336 = vmatprep.subr.mxu0 0.0
        %1337 = vmatpush1.msra.mxu0 0.0
        %1338 = vmatprep.subr.mxu0 0.0
        %1339 = vmatpush1.msra.mxu0 0.0
        %1340 = vmatprep.subr.mxu0 0.0
        %1341 = vmatpush1.msra.mxu0 0.0
        %1342 = vmatprep.subr.mxu0 0.0
        %1343 = vmatpush1.msra.mxu0 0.0
        %1344 = vmatprep.subr.mxu0 0.0
        %1345 = vmatpush1.msra.mxu0 0.0
        %1346 = vmatprep.subr.mxu0 0.0
        %1347 = vmatpush1.msra.mxu0 0.0
        %1348 = vmatprep.mubr.f32.mxu0 0.0
        %1349 = vmatmul.mubr.f32.gmra.mrb[0].mxu0 %v1259
        %v1350 = vpop.f32.mrb[0].mxu0
        %v1351 = vadd.f32 0.0, %v1350
        %v1352 = vpop.f32.mrb[0].mxu0
        %1353 = vmatprep.mubr.f32.mxu0 0.0
        %1354 = vmatmul.mubr.f32.gmra.mrb[0].mxu0 %v1260
        %v1355 = vpop.f32.mrb[0].mxu0
        %v1356 = vadd.f32 0.0, %v1355
        %v1357 = vpop.f32.mrb[0].mxu0
        %1358 = vmatprep.mubr.f32.mxu0 0.0
        %1359 = vmatmul.mubr.f32.gmra.mrb[0].mxu0 %v1261
        %v1360 = vpop.f32.mrb[0].mxu0
        %v1361 = vadd.f32 0.0, %v1360
        %v1362 = vpop.f32.mrb[0].mxu0
        %1363 = vmatprep.mubr.f32.mxu0 0.0
        %1364 = vmatmul.mubr.f32.gmra.mrb[0].mxu0 %v1262
        %v1365 = vpop.f32.mrb[0].mxu0
        %v1366 = vadd.f32 0.0, %v1365
        %v1367 = vpop.f32.mrb[0].mxu0
        %1368 = vmatprep.mubr.f32.mxu0 0.0
        %1369 = vmatmul.mubr.f32.gmra.mrb[0].mxu0 %v1263
        %v1370 = vpop.f32.mrb[0].mxu0
        %v1371 = vadd.f32 0.0, %v1370
        %v1372 = vpop.f32.mrb[0].mxu0
        %1373 = vmatprep.mubr.f32.mxu0 0.0
        %1374 = vmatmul.mubr.f32.gmra.mrb[0].mxu0 %v1264
        %v1375 = vpop.f32.mrb[0].mxu0
        %v1376 = vadd.f32 0.0, %v1375
        %v1377 = vpop.f32.mrb[0].mxu0
        %1378 = vmatprep.mubr.f32.mxu0 0.0
        %1379 = vmatmul.mubr.f32.gmra.mrb[0].mxu0 %v1265
        %v1380 = vpop.f32.mrb[0].mxu0
        %v1381 = vadd.f32 0.0, %v1380
        %v1382 = vpop.f32.mrb[0].mxu0
        %1383 = vmatprep.mubr.f32.mxu0 0.0
        %1384 = vmatmul.mubr.f32.gmra.mrb[0].mxu0 %v1266
        %v1385 = vpop.f32.mrb[0].mxu0
        %v1386 = vadd.f32 0.0, %v1385
        %v1387 = vpop.f32.mrb[0].mxu0
        %1388 = vdwg.mxu0
        %v1389 = vadd.f32 %v1211, %v1351
        %v1390 = vadd.f32 %v1212, %v1356
        %v1391 = vadd.f32 %v1213, %v1361
        %v1392 = vadd.f32 %v1214, %v1366
        %v1393 = vadd.f32 %v1215, %v1371
        %v1394 = vadd.f32 %v1216, %v1376
        %v1395 = vadd.f32 %v1217, %v1381
        %v1396 = vadd.f32 %v1218, %v1386
        %s1397 = scalar_lea.vmem [#allocation3], 512
        %v1398 = vld [vmem:[%s1397] sm:$0xff]
        %v1399 = vld [vmem:[%s1397 + $0x8] sm:$0xff]
        %v1400 = vld [vmem:[%s1397 + $0x10] sm:$0xff]
        %v1401 = vld [vmem:[%s1397 + $0x18] sm:$0xff]
        %v1402 = vld [vmem:[%s1397 + $0x20] sm:$0xff]
        %v1403 = vld [vmem:[%s1397 + $0x28] sm:$0xff]
        %v1404 = vld [vmem:[%s1397 + $0x30] sm:$0xff]
        %v1405 = vld [vmem:[%s1397 + $0x38] sm:$0xff]
        %v1406 = vld [vmem:[%s1397 + $0x40] sm:$0xff]
        %v1407 = vld [vmem:[%s1397 + $0x48] sm:$0xff]
        %v1408 = vld [vmem:[%s1397 + $0x50] sm:$0xff]
        %v1409 = vld [vmem:[%s1397 + $0x58] sm:$0xff]
        %v1410 = vld [vmem:[%s1397 + $0x60] sm:$0xff]
        %v1411 = vld [vmem:[%s1397 + $0x68] sm:$0xff]
        %v1412 = vld [vmem:[%s1397 + $0x70] sm:$0xff]
        %v1413 = vld [vmem:[%s1397 + $0x78] sm:$0xff]
        %1414 = vmatprep.subr.mxu0 0.0
        %1415 = vmatpush1.msra.mxu0 %v1398
        %1416 = vmatprep.subr.mxu0 0.0
        %1417 = vmatpush1.msra.mxu0 %v1399
        %1418 = vmatprep.subr.mxu0 0.0
        %1419 = vmatpush1.msra.mxu0 %v1400
        %1420 = vmatprep.subr.mxu0 0.0
        %1421 = vmatpush1.msra.mxu0 %v1401
        %1422 = vmatprep.subr.mxu0 0.0
        %1423 = vmatpush1.msra.mxu0 %v1402
        %1424 = vmatprep.subr.mxu0 0.0
        %1425 = vmatpush1.msra.mxu0 %v1403
        %1426 = vmatprep.subr.mxu0 0.0
        %1427 = vmatpush1.msra.mxu0 %v1404
        %1428 = vmatprep.subr.mxu0 0.0
        %1429 = vmatpush1.msra.mxu0 %v1405
        %1430 = vmatprep.subr.mxu0 0.0
        %1431 = vmatpush1.msra.mxu0 %v1406
        %1432 = vmatprep.subr.mxu0 0.0
        %1433 = vmatpush1.msra.mxu0 %v1407
        %1434 = vmatprep.subr.mxu0 0.0
        %1435 = vmatpush1.msra.mxu0 %v1408
        %1436 = vmatprep.subr.mxu0 0.0
        %1437 = vmatpush1.msra.mxu0 %v1409
        %1438 = vmatprep.subr.mxu0 0.0
        %1439 = vmatpush1.msra.mxu0 %v1410
        %1440 = vmatprep.subr.mxu0 0.0
        %1441 = vmatpush1.msra.mxu0 %v1411
        %1442 = vmatprep.subr.mxu0 0.0
        %1443 = vmatpush1.msra.mxu0 %v1412
        %1444 = vmatprep.subr.mxu0 0.0
        %1445 = vmatpush1.msra.mxu0 %v1413
        %1446 = vmatprep.subr.mxu0 0.0
        %1447 = vmatpush1.msra.mxu0 0.0
        %1448 = vmatprep.subr.mxu0 0.0
        %1449 = vmatpush1.msra.mxu0 0.0
        %1450 = vmatprep.subr.mxu0 0.0
        %1451 = vmatpush1.msra.mxu0 0.0
        %1452 = vmatprep.subr.mxu0 0.0
        %1453 = vmatpush1.msra.mxu0 0.0
        %1454 = vmatprep.subr.mxu0 0.0
        %1455 = vmatpush1.msra.mxu0 0.0
        %1456 = vmatprep.subr.mxu0 0.0
        %1457 = vmatpush1.msra.mxu0 0.0
        %1458 = vmatprep.subr.mxu0 0.0
        %1459 = vmatpush1.msra.mxu0 0.0
        %1460 = vmatprep.subr.mxu0 0.0
        %1461 = vmatpush1.msra.mxu0 0.0
        %1462 = vmatprep.subr.mxu0 0.0
        %1463 = vmatpush1.msra.mxu0 0.0
        %1464 = vmatprep.subr.mxu0 0.0
        %1465 = vmatpush1.msra.mxu0 0.0
        %1466 = vmatprep.subr.mxu0 0.0
        %1467 = vmatpush1.msra.mxu0 0.0
        %1468 = vmatprep.subr.mxu0 0.0
        %1469 = vmatpush1.msra.mxu0 0.0
        %1470 = vmatprep.subr.mxu0 0.0
        %1471 = vmatpush1.msra.mxu0 0.0
        %1472 = vmatprep.subr.mxu0 0.0
        %1473 = vmatpush1.msra.mxu0 0.0
        %1474 = vmatprep.subr.mxu0 0.0
        %1475 = vmatpush1.msra.mxu0 0.0
        %1476 = vmatprep.subr.mxu0 0.0
        %1477 = vmatpush1.msra.mxu0 0.0
        %1478 = vmatprep.mubr.f32.mxu0 0.0
        %1479 = vmatmul.mubr.f32.gmra.mrb[0].mxu0 %v642
        %v1480 = vpop.f32.mrb[0].mxu0
        %v1481 = vadd.f32 0.0, %v1480
        %v1482 = vpop.f32.mrb[0].mxu0
        %1483 = vmatprep.mubr.f32.mxu0 0.0
        %1484 = vmatmul.mubr.f32.gmra.mrb[0].mxu0 %v643
        %v1485 = vpop.f32.mrb[0].mxu0
        %v1486 = vadd.f32 0.0, %v1485
        %v1487 = vpop.f32.mrb[0].mxu0
        %1488 = vmatprep.mubr.f32.mxu0 0.0
        %1489 = vmatmul.mubr.f32.gmra.mrb[0].mxu0 %v644
        %v1490 = vpop.f32.mrb[0].mxu0
        %v1491 = vadd.f32 0.0, %v1490
        %v1492 = vpop.f32.mrb[0].mxu0
        %1493 = vmatprep.mubr.f32.mxu0 0.0
        %1494 = vmatmul.mubr.f32.gmra.mrb[0].mxu0 %v645
        %v1495 = vpop.f32.mrb[0].mxu0
        %v1496 = vadd.f32 0.0, %v1495
        %v1497 = vpop.f32.mrb[0].mxu0
        %1498 = vmatprep.mubr.f32.mxu0 0.0
        %1499 = vmatmul.mubr.f32.gmra.mrb[0].mxu0 %v646
        %v1500 = vpop.f32.mrb[0].mxu0
        %v1501 = vadd.f32 0.0, %v1500
        %v1502 = vpop.f32.mrb[0].mxu0
        %1503 = vmatprep.mubr.f32.mxu0 0.0
        %1504 = vmatmul.mubr.f32.gmra.mrb[0].mxu0 %v647
        %v1505 = vpop.f32.mrb[0].mxu0
        %v1506 = vadd.f32 0.0, %v1505
        %v1507 = vpop.f32.mrb[0].mxu0
        %1508 = vmatprep.mubr.f32.mxu0 0.0
        %1509 = vmatmul.mubr.f32.gmra.mrb[0].mxu0 %v648
        %v1510 = vpop.f32.mrb[0].mxu0
        %v1511 = vadd.f32 0.0, %v1510
        %v1512 = vpop.f32.mrb[0].mxu0
        %1513 = vmatprep.mubr.f32.mxu0 0.0
        %1514 = vmatmul.mubr.f32.gmra.mrb[0].mxu0 %v649
        %v1515 = vpop.f32.mrb[0].mxu0
        %v1516 = vadd.f32 0.0, %v1515
        %v1517 = vpop.f32.mrb[0].mxu0
        %1518 = vdwg.mxu0
        %v1519 = vadd.f32 %v1389, %v1481
        %v1520 = vadd.f32 %v1390, %v1486
        %v1521 = vadd.f32 %v1391, %v1491
        %v1522 = vadd.f32 %v1392, %v1496
        %v1523 = vadd.f32 %v1393, %v1501
        %v1524 = vadd.f32 %v1394, %v1506
        %v1525 = vadd.f32 %v1395, %v1511
        %v1526 = vadd.f32 %v1396, %v1516
        %v1527 = vsel %vm634, 1, 0
        %v1528 = vsel %vm635, 1, 0
        %v1529 = vsel %vm636, 1, 0
        %v1530 = vsel %vm637, 1, 0
        %v1531 = vsel %vm638, 1, 0
        %v1532 = vsel %vm639, 1, 0
        %v1533 = vsel %vm640, 1, 0
        %v1534 = vsel %vm641, 1, 0
        %1535 = vset.pattern.permute.xlu0 0
        %1536 = vperm.xlu0 %1535, %v1527
        %v1537 = vpop.permute.xlu0 %1536
        %1538 = vset.pattern.permute.xlu0 0
        %1539 = vperm.xlu0 %1538, %v1528
        %v1540 = vpop.permute.xlu0 %1539
        %1541 = vset.pattern.permute.xlu0 0
        %1542 = vperm.xlu0 %1541, %v1529
        %v1543 = vpop.permute.xlu0 %1542
        %1544 = vset.pattern.permute.xlu0 0
        %1545 = vperm.xlu0 %1544, %v1530
        %v1546 = vpop.permute.xlu0 %1545
        %1547 = vset.pattern.permute.xlu0 0
        %1548 = vperm.xlu0 %1547, %v1531
        %v1549 = vpop.permute.xlu0 %1548
        %1550 = vset.pattern.permute.xlu0 0
        %1551 = vperm.xlu0 %1550, %v1532
        %v1552 = vpop.permute.xlu0 %1551
        %1553 = vset.pattern.permute.xlu0 0
        %1554 = vperm.xlu0 %1553, %v1533
        %v1555 = vpop.permute.xlu0 %1554
        %1556 = vset.pattern.permute.xlu0 0
        %1557 = vperm.xlu0 %1556, %v1534
        %v1558 = vpop.permute.xlu0 %1557
        %vm1559 = vcmp.eq.s32.totalorder %v1537, 1
        %vm1560 = vcmp.eq.s32.totalorder %v1540, 1
        %vm1561 = vcmp.eq.s32.totalorder %v1543, 1
        %vm1562 = vcmp.eq.s32.totalorder %v1546, 1
        %vm1563 = vcmp.eq.s32.totalorder %v1549, 1
        %vm1564 = vcmp.eq.s32.totalorder %v1552, 1
        %vm1565 = vcmp.eq.s32.totalorder %v1555, 1
        %vm1566 = vcmp.eq.s32.totalorder %v1558, 1
        %v1567 = vsel %vm1559, %v1031, 0.0
        %v1568 = vsel %vm1560, %v1030, 0.0
        %v1569 = vsel %vm1561, %v1029, 0.0
        %v1570 = vsel %vm1562, %v1028, 0.0
        %v1571 = vsel %vm1563, %v1027, 0.0
        %v1572 = vsel %vm1564, %v1026, 0.0
        %v1573 = vsel %vm1565, %v1025, 0.0
        %v1574 = vsel %vm1566, %v1032, 0.0
        %s1575 = scalar_lea.vmem [#allocation3], 640
        %v1576 = vld [vmem:[%s1575] sm:$0xff]
        %v1577 = vld [vmem:[%s1575 + $0x8] sm:$0xff]
        %v1578 = vld [vmem:[%s1575 + $0x10] sm:$0xff]
        %v1579 = vld [vmem:[%s1575 + $0x18] sm:$0xff]
        %v1580 = vld [vmem:[%s1575 + $0x20] sm:$0xff]
        %v1581 = vld [vmem:[%s1575 + $0x28] sm:$0xff]
        %v1582 = vld [vmem:[%s1575 + $0x30] sm:$0xff]
        %v1583 = vld [vmem:[%s1575 + $0x38] sm:$0xff]
        %v1584 = vld [vmem:[%s1575 + $0x40] sm:$0xff]
        %v1585 = vld [vmem:[%s1575 + $0x48] sm:$0xff]
        %v1586 = vld [vmem:[%s1575 + $0x50] sm:$0xff]
        %v1587 = vld [vmem:[%s1575 + $0x58] sm:$0xff]
        %v1588 = vld [vmem:[%s1575 + $0x60] sm:$0xff]
        %v1589 = vld [vmem:[%s1575 + $0x68] sm:$0xff]
        %v1590 = vld [vmem:[%s1575 + $0x70] sm:$0xff]
        %v1591 = vld [vmem:[%s1575 + $0x78] sm:$0xff]
        %1592 = vmatprep.subr.mxu0 0.0
        %1593 = vmatpush1.msra.mxu0 %v1576
        %1594 = vmatprep.subr.mxu0 0.0
        %1595 = vmatpush1.msra.mxu0 %v1577
        %1596 = vmatprep.subr.mxu0 0.0
        %1597 = vmatpush1.msra.mxu0 %v1578
        %1598 = vmatprep.subr.mxu0 0.0
        %1599 = vmatpush1.msra.mxu0 %v1579
        %1600 = vmatprep.subr.mxu0 0.0
        %1601 = vmatpush1.msra.mxu0 %v1580
        %1602 = vmatprep.subr.mxu0 0.0
        %1603 = vmatpush1.msra.mxu0 %v1581
        %1604 = vmatprep.subr.mxu0 0.0
        %1605 = vmatpush1.msra.mxu0 %v1582
        %1606 = vmatprep.subr.mxu0 0.0
        %1607 = vmatpush1.msra.mxu0 %v1583
        %1608 = vmatprep.subr.mxu0 0.0
        %1609 = vmatpush1.msra.mxu0 %v1584
        %1610 = vmatprep.subr.mxu0 0.0
        %1611 = vmatpush1.msra.mxu0 %v1585
        %1612 = vmatprep.subr.mxu0 0.0
        %1613 = vmatpush1.msra.mxu0 %v1586
        %1614 = vmatprep.subr.mxu0 0.0
        %1615 = vmatpush1.msra.mxu0 %v1587
        %1616 = vmatprep.subr.mxu0 0.0
        %1617 = vmatpush1.msra.mxu0 %v1588
        %1618 = vmatprep.subr.mxu0 0.0
        %1619 = vmatpush1.msra.mxu0 %v1589
        %1620 = vmatprep.subr.mxu0 0.0
        %1621 = vmatpush1.msra.mxu0 %v1590
        %1622 = vmatprep.subr.mxu0 0.0
        %1623 = vmatpush1.msra.mxu0 %v1591
        %1624 = vmatprep.subr.mxu0 0.0
        %1625 = vmatpush1.msra.mxu0 0.0
        %1626 = vmatprep.subr.mxu0 0.0
        %1627 = vmatpush1.msra.mxu0 0.0
        %1628 = vmatprep.subr.mxu0 0.0
        %1629 = vmatpush1.msra.mxu0 0.0
        %1630 = vmatprep.subr.mxu0 0.0
        %1631 = vmatpush1.msra.mxu0 0.0
        %1632 = vmatprep.subr.mxu0 0.0
        %1633 = vmatpush1.msra.mxu0 0.0
        %1634 = vmatprep.subr.mxu0 0.0
        %1635 = vmatpush1.msra.mxu0 0.0
        %1636 = vmatprep.subr.mxu0 0.0
        %1637 = vmatpush1.msra.mxu0 0.0
        %1638 = vmatprep.subr.mxu0 0.0
        %1639 = vmatpush1.msra.mxu0 0.0
        %1640 = vmatprep.subr.mxu0 0.0
        %1641 = vmatpush1.msra.mxu0 0.0
        %1642 = vmatprep.subr.mxu0 0.0
        %1643 = vmatpush1.msra.mxu0 0.0
        %1644 = vmatprep.subr.mxu0 0.0
        %1645 = vmatpush1.msra.mxu0 0.0
        %1646 = vmatprep.subr.mxu0 0.0
        %1647 = vmatpush1.msra.mxu0 0.0
        %1648 = vmatprep.subr.mxu0 0.0
        %1649 = vmatpush1.msra.mxu0 0.0
        %1650 = vmatprep.subr.mxu0 0.0
        %1651 = vmatpush1.msra.mxu0 0.0
        %1652 = vmatprep.subr.mxu0 0.0
        %1653 = vmatpush1.msra.mxu0 0.0
        %1654 = vmatprep.subr.mxu0 0.0
        %1655 = vmatpush1.msra.mxu0 0.0
        %1656 = vmatprep.mubr.f32.mxu0 0.0
        %1657 = vmatmul.mubr.f32.gmra.mrb[0].mxu0 %v1567
        %v1658 = vpop.f32.mrb[0].mxu0
        %v1659 = vadd.f32 0.0, %v1658
        %v1660 = vpop.f32.mrb[0].mxu0
        %1661 = vmatprep.mubr.f32.mxu0 0.0
        %1662 = vmatmul.mubr.f32.gmra.mrb[0].mxu0 %v1568
        %v1663 = vpop.f32.mrb[0].mxu0
        %v1664 = vadd.f32 0.0, %v1663
        %v1665 = vpop.f32.mrb[0].mxu0
        %1666 = vmatprep.mubr.f32.mxu0 0.0
        %1667 = vmatmul.mubr.f32.gmra.mrb[0].mxu0 %v1569
        %v1668 = vpop.f32.mrb[0].mxu0
        %v1669 = vadd.f32 0.0, %v1668
        %v1670 = vpop.f32.mrb[0].mxu0
        %1671 = vmatprep.mubr.f32.mxu0 0.0
        %1672 = vmatmul.mubr.f32.gmra.mrb[0].mxu0 %v1570
        %v1673 = vpop.f32.mrb[0].mxu0
        %v1674 = vadd.f32 0.0, %v1673
        %v1675 = vpop.f32.mrb[0].mxu0
        %1676 = vmatprep.mubr.f32.mxu0 0.0
        %1677 = vmatmul.mubr.f32.gmra.mrb[0].mxu0 %v1571
        %v1678 = vpop.f32.mrb[0].mxu0
        %v1679 = vadd.f32 0.0, %v1678
        %v1680 = vpop.f32.mrb[0].mxu0
        %1681 = vmatprep.mubr.f32.mxu0 0.0
        %1682 = vmatmul.mubr.f32.gmra.mrb[0].mxu0 %v1572
        %v1683 = vpop.f32.mrb[0].mxu0
        %v1684 = vadd.f32 0.0, %v1683
        %v1685 = vpop.f32.mrb[0].mxu0
        %1686 = vmatprep.mubr.f32.mxu0 0.0
        %1687 = vmatmul.mubr.f32.gmra.mrb[0].mxu0 %v1573
        %v1688 = vpop.f32.mrb[0].mxu0
        %v1689 = vadd.f32 0.0, %v1688
        %v1690 = vpop.f32.mrb[0].mxu0
        %1691 = vmatprep.mubr.f32.mxu0 0.0
        %1692 = vmatmul.mubr.f32.gmra.mrb[0].mxu0 %v1574
        %v1693 = vpop.f32.mrb[0].mxu0
        %v1694 = vadd.f32 0.0, %v1693
        %v1695 = vpop.f32.mrb[0].mxu0
        %1696 = vdwg.mxu0
        %v1697 = vadd.f32 %v1519, %v1659
        %v1698 = vadd.f32 %v1520, %v1664
        %v1699 = vadd.f32 %v1521, %v1669
        %v1700 = vadd.f32 %v1522, %v1674
        %v1701 = vadd.f32 %v1523, %v1679
        %v1702 = vadd.f32 %v1524, %v1684
        %v1703 = vadd.f32 %v1525, %v1689
        %v1704 = vadd.f32 %v1526, %v1694
        %vm1705 = vmand %vm618, %vm626
        %vm1706 = vmand %vm619, %vm627
        %vm1707 = vmand %vm620, %vm628
        %vm1708 = vmand %vm621, %vm629
        %vm1709 = vmand %vm622, %vm630
        %vm1710 = vmand %vm623, %vm631
        %vm1711 = vmand %vm624, %vm632
        %vm1712 = vmand %vm625, %vm633
        %v1713 = vsel %vm1705, 1, 0
        %v1714 = vsel %vm1706, 1, 0
        %v1715 = vsel %vm1707, 1, 0
        %v1716 = vsel %vm1708, 1, 0
        %v1717 = vsel %vm1709, 1, 0
        %v1718 = vsel %vm1710, 1, 0
        %v1719 = vsel %vm1711, 1, 0
        %v1720 = vsel %vm1712, 1, 0
        %1721 = vset.pattern.permute.xlu0 0
        %1722 = vperm.xlu0 %1721, %v1713
        %v1723 = vpop.permute.xlu0 %1722
        %1724 = vset.pattern.permute.xlu0 0
        %1725 = vperm.xlu0 %1724, %v1714
        %v1726 = vpop.permute.xlu0 %1725
        %1727 = vset.pattern.permute.xlu0 0
        %1728 = vperm.xlu0 %1727, %v1715
        %v1729 = vpop.permute.xlu0 %1728
        %1730 = vset.pattern.permute.xlu0 0
        %1731 = vperm.xlu0 %1730, %v1716
        %v1732 = vpop.permute.xlu0 %1731
        %1733 = vset.pattern.permute.xlu0 0
        %1734 = vperm.xlu0 %1733, %v1717
        %v1735 = vpop.permute.xlu0 %1734
        %1736 = vset.pattern.permute.xlu0 0
        %1737 = vperm.xlu0 %1736, %v1718
        %v1738 = vpop.permute.xlu0 %1737
        %1739 = vset.pattern.permute.xlu0 0
        %1740 = vperm.xlu0 %1739, %v1719
        %v1741 = vpop.permute.xlu0 %1740
        %1742 = vset.pattern.permute.xlu0 0
        %1743 = vperm.xlu0 %1742, %v1720
        %v1744 = vpop.permute.xlu0 %1743
        %vm1745 = vcmp.eq.s32.totalorder %v1723, 1
        %vm1746 = vcmp.eq.s32.totalorder %v1726, 1
        %vm1747 = vcmp.eq.s32.totalorder %v1729, 1
        %vm1748 = vcmp.eq.s32.totalorder %v1732, 1
        %vm1749 = vcmp.eq.s32.totalorder %v1735, 1
        %vm1750 = vcmp.eq.s32.totalorder %v1738, 1
        %vm1751 = vcmp.eq.s32.totalorder %v1741, 1
        %vm1752 = vcmp.eq.s32.totalorder %v1744, 1
        %v1753 = vsel %vm1745, %v667, 0.0
        %v1754 = vsel %vm1746, %v666, 0.0
        %v1755 = vsel %vm1747, %v665, 0.0
        %v1756 = vsel %vm1748, %v664, 0.0
        %v1757 = vsel %vm1749, %v663, 0.0
        %v1758 = vsel %vm1750, %v662, 0.0
        %v1759 = vsel %vm1751, %v661, 0.0
        %v1760 = vsel %vm1752, %v668, 0.0
        %s1761 = scalar_lea.vmem [#allocation3], 768
        %v1762 = vld [vmem:[%s1761] sm:$0xff]
        %v1763 = vld [vmem:[%s1761 + $0x8] sm:$0xff]
        %v1764 = vld [vmem:[%s1761 + $0x10] sm:$0xff]
        %v1765 = vld [vmem:[%s1761 + $0x18] sm:$0xff]
        %v1766 = vld [vmem:[%s1761 + $0x20] sm:$0xff]
        %v1767 = vld [vmem:[%s1761 + $0x28] sm:$0xff]
        %v1768 = vld [vmem:[%s1761 + $0x30] sm:$0xff]
        %v1769 = vld [vmem:[%s1761 + $0x38] sm:$0xff]
        %v1770 = vld [vmem:[%s1761 + $0x40] sm:$0xff]
        %v1771 = vld [vmem:[%s1761 + $0x48] sm:$0xff]
        %v1772 = vld [vmem:[%s1761 + $0x50] sm:$0xff]
        %v1773 = vld [vmem:[%s1761 + $0x58] sm:$0xff]
        %v1774 = vld [vmem:[%s1761 + $0x60] sm:$0xff]
        %v1775 = vld [vmem:[%s1761 + $0x68] sm:$0xff]
        %v1776 = vld [vmem:[%s1761 + $0x70] sm:$0xff]
        %v1777 = vld [vmem:[%s1761 + $0x78] sm:$0xff]
        %1778 = vmatprep.subr.mxu0 0.0
        %1779 = vmatpush1.msra.mxu0 %v1762
        %1780 = vmatprep.subr.mxu0 0.0
        %1781 = vmatpush1.msra.mxu0 %v1763
        %1782 = vmatprep.subr.mxu0 0.0
        %1783 = vmatpush1.msra.mxu0 %v1764
        %1784 = vmatprep.subr.mxu0 0.0
        %1785 = vmatpush1.msra.mxu0 %v1765
        %1786 = vmatprep.subr.mxu0 0.0
        %1787 = vmatpush1.msra.mxu0 %v1766
        %1788 = vmatprep.subr.mxu0 0.0
        %1789 = vmatpush1.msra.mxu0 %v1767
        %1790 = vmatprep.subr.mxu0 0.0
        %1791 = vmatpush1.msra.mxu0 %v1768
        %1792 = vmatprep.subr.mxu0 0.0
        %1793 = vmatpush1.msra.mxu0 %v1769
        %1794 = vmatprep.subr.mxu0 0.0
        %1795 = vmatpush1.msra.mxu0 %v1770
        %1796 = vmatprep.subr.mxu0 0.0
        %1797 = vmatpush1.msra.mxu0 %v1771
        %1798 = vmatprep.subr.mxu0 0.0
        %1799 = vmatpush1.msra.mxu0 %v1772
        %1800 = vmatprep.subr.mxu0 0.0
        %1801 = vmatpush1.msra.mxu0 %v1773
        %1802 = vmatprep.subr.mxu0 0.0
        %1803 = vmatpush1.msra.mxu0 %v1774
        %1804 = vmatprep.subr.mxu0 0.0
        %1805 = vmatpush1.msra.mxu0 %v1775
        %1806 = vmatprep.subr.mxu0 0.0
        %1807 = vmatpush1.msra.mxu0 %v1776
        %1808 = vmatprep.subr.mxu0 0.0
        %1809 = vmatpush1.msra.mxu0 %v1777
        %1810 = vmatprep.subr.mxu0 0.0
        %1811 = vmatpush1.msra.mxu0 0.0
        %1812 = vmatprep.subr.mxu0 0.0
        %1813 = vmatpush1.msra.mxu0 0.0
        %1814 = vmatprep.subr.mxu0 0.0
        %1815 = vmatpush1.msra.mxu0 0.0
        %1816 = vmatprep.subr.mxu0 0.0
        %1817 = vmatpush1.msra.mxu0 0.0
        %1818 = vmatprep.subr.mxu0 0.0
        %1819 = vmatpush1.msra.mxu0 0.0
        %1820 = vmatprep.subr.mxu0 0.0
        %1821 = vmatpush1.msra.mxu0 0.0
        %1822 = vmatprep.subr.mxu0 0.0
        %1823 = vmatpush1.msra.mxu0 0.0
        %1824 = vmatprep.subr.mxu0 0.0
        %1825 = vmatpush1.msra.mxu0 0.0
        %1826 = vmatprep.subr.mxu0 0.0
        %1827 = vmatpush1.msra.mxu0 0.0
        %1828 = vmatprep.subr.mxu0 0.0
        %1829 = vmatpush1.msra.mxu0 0.0
        %1830 = vmatprep.subr.mxu0 0.0
        %1831 = vmatpush1.msra.mxu0 0.0
        %1832 = vmatprep.subr.mxu0 0.0
        %1833 = vmatpush1.msra.mxu0 0.0
        %1834 = vmatprep.subr.mxu0 0.0
        %1835 = vmatpush1.msra.mxu0 0.0
        %1836 = vmatprep.subr.mxu0 0.0
        %1837 = vmatpush1.msra.mxu0 0.0
        %1838 = vmatprep.subr.mxu0 0.0
        %1839 = vmatpush1.msra.mxu0 0.0
        %1840 = vmatprep.subr.mxu0 0.0
        %1841 = vmatpush1.msra.mxu0 0.0
        %1842 = vmatprep.mubr.f32.mxu0 0.0
        %1843 = vmatmul.mubr.f32.gmra.mrb[0].mxu0 %v1753
        %v1844 = vpop.f32.mrb[0].mxu0
        %v1845 = vadd.f32 0.0, %v1844
        %v1846 = vpop.f32.mrb[0].mxu0
        %1847 = vmatprep.mubr.f32.mxu0 0.0
        %1848 = vmatmul.mubr.f32.gmra.mrb[0].mxu0 %v1754
        %v1849 = vpop.f32.mrb[0].mxu0
        %v1850 = vadd.f32 0.0, %v1849
        %v1851 = vpop.f32.mrb[0].mxu0
        %1852 = vmatprep.mubr.f32.mxu0 0.0
        %1853 = vmatmul.mubr.f32.gmra.mrb[0].mxu0 %v1755
        %v1854 = vpop.f32.mrb[0].mxu0
        %v1855 = vadd.f32 0.0, %v1854
        %v1856 = vpop.f32.mrb[0].mxu0
        %1857 = vmatprep.mubr.f32.mxu0 0.0
        %1858 = vmatmul.mubr.f32.gmra.mrb[0].mxu0 %v1756
        %v1859 = vpop.f32.mrb[0].mxu0
        %v1860 = vadd.f32 0.0, %v1859
        %v1861 = vpop.f32.mrb[0].mxu0
        %1862 = vmatprep.mubr.f32.mxu0 0.0
        %1863 = vmatmul.mubr.f32.gmra.mrb[0].mxu0 %v1757
        %v1864 = vpop.f32.mrb[0].mxu0
        %v1865 = vadd.f32 0.0, %v1864
        %v1866 = vpop.f32.mrb[0].mxu0
        %1867 = vmatprep.mubr.f32.mxu0 0.0
        %1868 = vmatmul.mubr.f32.gmra.mrb[0].mxu0 %v1758
        %v1869 = vpop.f32.mrb[0].mxu0
        %v1870 = vadd.f32 0.0, %v1869
        %v1871 = vpop.f32.mrb[0].mxu0
        %1872 = vmatprep.mubr.f32.mxu0 0.0
        %1873 = vmatmul.mubr.f32.gmra.mrb[0].mxu0 %v1759
        %v1874 = vpop.f32.mrb[0].mxu0
        %v1875 = vadd.f32 0.0, %v1874
        %v1876 = vpop.f32.mrb[0].mxu0
        %1877 = vmatprep.mubr.f32.mxu0 0.0
        %1878 = vmatmul.mubr.f32.gmra.mrb[0].mxu0 %v1760
        %v1879 = vpop.f32.mrb[0].mxu0
        %v1880 = vadd.f32 0.0, %v1879
        %v1881 = vpop.f32.mrb[0].mxu0
        %1882 = vdwg.mxu0
        %v1883 = vadd.f32 %v1697, %v1845
        %v1884 = vadd.f32 %v1698, %v1850
        %v1885 = vadd.f32 %v1699, %v1855
        %v1886 = vadd.f32 %v1700, %v1860
        %v1887 = vadd.f32 %v1701, %v1865
        %v1888 = vadd.f32 %v1702, %v1870
        %v1889 = vadd.f32 %v1703, %v1875
        %v1890 = vadd.f32 %v1704, %v1880
        %v1891 = vsel %vm618, 1, 0
        %v1892 = vsel %vm619, 1, 0
        %v1893 = vsel %vm620, 1, 0
        %v1894 = vsel %vm621, 1, 0
        %v1895 = vsel %vm622, 1, 0
        %v1896 = vsel %vm623, 1, 0
        %v1897 = vsel %vm624, 1, 0
        %v1898 = vsel %vm625, 1, 0
        %1899 = vset.pattern.permute.xlu0 0
        %1900 = vperm.xlu0 %1899, %v1891
        %v1901 = vpop.permute.xlu0 %1900
        %1902 = vset.pattern.permute.xlu0 0
        %1903 = vperm.xlu0 %1902, %v1892
        %v1904 = vpop.permute.xlu0 %1903
        %1905 = vset.pattern.permute.xlu0 0
        %1906 = vperm.xlu0 %1905, %v1893
        %v1907 = vpop.permute.xlu0 %1906
        %1908 = vset.pattern.permute.xlu0 0
        %1909 = vperm.xlu0 %1908, %v1894
        %v1910 = vpop.permute.xlu0 %1909
        %1911 = vset.pattern.permute.xlu0 0
        %1912 = vperm.xlu0 %1911, %v1895
        %v1913 = vpop.permute.xlu0 %1912
        %1914 = vset.pattern.permute.xlu0 0
        %1915 = vperm.xlu0 %1914, %v1896
        %v1916 = vpop.permute.xlu0 %1915
        %1917 = vset.pattern.permute.xlu0 0
        %1918 = vperm.xlu0 %1917, %v1897
        %v1919 = vpop.permute.xlu0 %1918
        %1920 = vset.pattern.permute.xlu0 0
        %1921 = vperm.xlu0 %1920, %v1898
        %v1922 = vpop.permute.xlu0 %1921
        %vm1923 = vcmp.eq.s32.totalorder %v1901, 1
        %vm1924 = vcmp.eq.s32.totalorder %v1904, 1
        %vm1925 = vcmp.eq.s32.totalorder %v1907, 1
        %vm1926 = vcmp.eq.s32.totalorder %v1910, 1
        %vm1927 = vcmp.eq.s32.totalorder %v1913, 1
        %vm1928 = vcmp.eq.s32.totalorder %v1916, 1
        %vm1929 = vcmp.eq.s32.totalorder %v1919, 1
        %vm1930 = vcmp.eq.s32.totalorder %v1922, 1
        %v1931 = vsel %vm1923, %v643, 0.0
        %v1932 = vsel %vm1924, %v644, 0.0
        %v1933 = vsel %vm1925, %v645, 0.0
        %v1934 = vsel %vm1926, %v646, 0.0
        %v1935 = vsel %vm1927, %v647, 0.0
        %v1936 = vsel %vm1928, %v648, 0.0
        %v1937 = vsel %vm1929, %v649, 0.0
        %v1938 = vsel %vm1930, %v642, 0.0
        %s1939 = scalar_lea.vmem [#allocation3], 896
        %v1940 = vld [vmem:[%s1939] sm:$0xff]
        %v1941 = vld [vmem:[%s1939 + $0x8] sm:$0xff]
        %v1942 = vld [vmem:[%s1939 + $0x10] sm:$0xff]
        %v1943 = vld [vmem:[%s1939 + $0x18] sm:$0xff]
        %v1944 = vld [vmem:[%s1939 + $0x20] sm:$0xff]
        %v1945 = vld [vmem:[%s1939 + $0x28] sm:$0xff]
        %v1946 = vld [vmem:[%s1939 + $0x30] sm:$0xff]
        %v1947 = vld [vmem:[%s1939 + $0x38] sm:$0xff]
        %v1948 = vld [vmem:[%s1939 + $0x40] sm:$0xff]
        %v1949 = vld [vmem:[%s1939 + $0x48] sm:$0xff]
        %v1950 = vld [vmem:[%s1939 + $0x50] sm:$0xff]
        %v1951 = vld [vmem:[%s1939 + $0x58] sm:$0xff]
        %v1952 = vld [vmem:[%s1939 + $0x60] sm:$0xff]
        %v1953 = vld [vmem:[%s1939 + $0x68] sm:$0xff]
        %v1954 = vld [vmem:[%s1939 + $0x70] sm:$0xff]
        %v1955 = vld [vmem:[%s1939 + $0x78] sm:$0xff]
        %1956 = vmatprep.subr.mxu0 0.0
        %1957 = vmatpush1.msra.mxu0 %v1940
        %1958 = vmatprep.subr.mxu0 0.0
        %1959 = vmatpush1.msra.mxu0 %v1941
        %1960 = vmatprep.subr.mxu0 0.0
        %1961 = vmatpush1.msra.mxu0 %v1942
        %1962 = vmatprep.subr.mxu0 0.0
        %1963 = vmatpush1.msra.mxu0 %v1943
        %1964 = vmatprep.subr.mxu0 0.0
        %1965 = vmatpush1.msra.mxu0 %v1944
        %1966 = vmatprep.subr.mxu0 0.0
        %1967 = vmatpush1.msra.mxu0 %v1945
        %1968 = vmatprep.subr.mxu0 0.0
        %1969 = vmatpush1.msra.mxu0 %v1946
        %1970 = vmatprep.subr.mxu0 0.0
        %1971 = vmatpush1.msra.mxu0 %v1947
        %1972 = vmatprep.subr.mxu0 0.0
        %1973 = vmatpush1.msra.mxu0 %v1948
        %1974 = vmatprep.subr.mxu0 0.0
        %1975 = vmatpush1.msra.mxu0 %v1949
        %1976 = vmatprep.subr.mxu0 0.0
        %1977 = vmatpush1.msra.mxu0 %v1950
        %1978 = vmatprep.subr.mxu0 0.0
        %1979 = vmatpush1.msra.mxu0 %v1951
        %1980 = vmatprep.subr.mxu0 0.0
        %1981 = vmatpush1.msra.mxu0 %v1952
        %1982 = vmatprep.subr.mxu0 0.0
        %1983 = vmatpush1.msra.mxu0 %v1953
        %1984 = vmatprep.subr.mxu0 0.0
        %1985 = vmatpush1.msra.mxu0 %v1954
        %1986 = vmatprep.subr.mxu0 0.0
        %1987 = vmatpush1.msra.mxu0 %v1955
        %1988 = vmatprep.subr.mxu0 0.0
        %1989 = vmatpush1.msra.mxu0 0.0
        %1990 = vmatprep.subr.mxu0 0.0
        %1991 = vmatpush1.msra.mxu0 0.0
        %1992 = vmatprep.subr.mxu0 0.0
        %1993 = vmatpush1.msra.mxu0 0.0
        %1994 = vmatprep.subr.mxu0 0.0
        %1995 = vmatpush1.msra.mxu0 0.0
        %1996 = vmatprep.subr.mxu0 0.0
        %1997 = vmatpush1.msra.mxu0 0.0
        %1998 = vmatprep.subr.mxu0 0.0
        %1999 = vmatpush1.msra.mxu0 0.0
        %2000 = vmatprep.subr.mxu0 0.0
        %2001 = vmatpush1.msra.mxu0 0.0
        %2002 = vmatprep.subr.mxu0 0.0
        %2003 = vmatpush1.msra.mxu0 0.0
        %2004 = vmatprep.subr.mxu0 0.0
        %2005 = vmatpush1.msra.mxu0 0.0
        %2006 = vmatprep.subr.mxu0 0.0
        %2007 = vmatpush1.msra.mxu0 0.0
        %2008 = vmatprep.subr.mxu0 0.0
        %2009 = vmatpush1.msra.mxu0 0.0
        %2010 = vmatprep.subr.mxu0 0.0
        %2011 = vmatpush1.msra.mxu0 0.0
        %2012 = vmatprep.subr.mxu0 0.0
        %2013 = vmatpush1.msra.mxu0 0.0
        %2014 = vmatprep.subr.mxu0 0.0
        %2015 = vmatpush1.msra.mxu0 0.0
        %2016 = vmatprep.subr.mxu0 0.0
        %2017 = vmatpush1.msra.mxu0 0.0
        %2018 = vmatprep.subr.mxu0 0.0
        %2019 = vmatpush1.msra.mxu0 0.0
        %2020 = vmatprep.mubr.f32.mxu0 0.0
        %2021 = vmatmul.mubr.f32.gmra.mrb[0].mxu0 %v1931
        %v2022 = vpop.f32.mrb[0].mxu0
        %v2023 = vadd.f32 0.0, %v2022
        %v2024 = vpop.f32.mrb[0].mxu0
        %2025 = vmatprep.mubr.f32.mxu0 0.0
        %2026 = vmatmul.mubr.f32.gmra.mrb[0].mxu0 %v1932
        %v2027 = vpop.f32.mrb[0].mxu0
        %v2028 = vadd.f32 0.0, %v2027
        %v2029 = vpop.f32.mrb[0].mxu0
        %2030 = vmatprep.mubr.f32.mxu0 0.0
        %2031 = vmatmul.mubr.f32.gmra.mrb[0].mxu0 %v1933
        %v2032 = vpop.f32.mrb[0].mxu0
        %v2033 = vadd.f32 0.0, %v2032
        %v2034 = vpop.f32.mrb[0].mxu0
        %2035 = vmatprep.mubr.f32.mxu0 0.0
        %2036 = vmatmul.mubr.f32.gmra.mrb[0].mxu0 %v1934
        %v2037 = vpop.f32.mrb[0].mxu0
        %v2038 = vadd.f32 0.0, %v2037
        %v2039 = vpop.f32.mrb[0].mxu0
        %2040 = vmatprep.mubr.f32.mxu0 0.0
        %2041 = vmatmul.mubr.f32.gmra.mrb[0].mxu0 %v1935
        %v2042 = vpop.f32.mrb[0].mxu0
        %v2043 = vadd.f32 0.0, %v2042
        %v2044 = vpop.f32.mrb[0].mxu0
        %2045 = vmatprep.mubr.f32.mxu0 0.0
        %2046 = vmatmul.mubr.f32.gmra.mrb[0].mxu0 %v1936
        %v2047 = vpop.f32.mrb[0].mxu0
        %v2048 = vadd.f32 0.0, %v2047
        %v2049 = vpop.f32.mrb[0].mxu0
        %2050 = vmatprep.mubr.f32.mxu0 0.0
        %2051 = vmatmul.mubr.f32.gmra.mrb[0].mxu0 %v1937
        %v2052 = vpop.f32.mrb[0].mxu0
        %v2053 = vadd.f32 0.0, %v2052
        %v2054 = vpop.f32.mrb[0].mxu0
        %2055 = vmatprep.mubr.f32.mxu0 0.0
        %2056 = vmatmul.mubr.f32.gmra.mrb[0].mxu0 %v1938
        %v2057 = vpop.f32.mrb[0].mxu0
        %v2058 = vadd.f32 0.0, %v2057
        %v2059 = vpop.f32.mrb[0].mxu0
        %2060 = vdwg.mxu0
        %v2061 = vadd.f32 %v1883, %v2023
        %v2062 = vadd.f32 %v1884, %v2028
        %v2063 = vadd.f32 %v1885, %v2033
        %v2064 = vadd.f32 %v1886, %v2038
        %v2065 = vadd.f32 %v1887, %v2043
        %v2066 = vadd.f32 %v1888, %v2048
        %v2067 = vadd.f32 %v1889, %v2053
        %v2068 = vadd.f32 %v1890, %v2058
        %vm2069 = vmand %vm618, %vm634
        %vm2070 = vmand %vm619, %vm635
        %vm2071 = vmand %vm620, %vm636
        %vm2072 = vmand %vm621, %vm637
        %vm2073 = vmand %vm622, %vm638
        %vm2074 = vmand %vm623, %vm639
        %vm2075 = vmand %vm624, %vm640
        %vm2076 = vmand %vm625, %vm641
        %v2077 = vsel %vm2069, 1, 0
        %v2078 = vsel %vm2070, 1, 0
        %v2079 = vsel %vm2071, 1, 0
        %v2080 = vsel %vm2072, 1, 0
        %v2081 = vsel %vm2073, 1, 0
        %v2082 = vsel %vm2074, 1, 0
        %v2083 = vsel %vm2075, 1, 0
        %v2084 = vsel %vm2076, 1, 0
        %2085 = vset.pattern.permute.xlu0 0
        %2086 = vperm.xlu0 %2085, %v2077
        %v2087 = vpop.permute.xlu0 %2086
        %2088 = vset.pattern.permute.xlu0 0
        %2089 = vperm.xlu0 %2088, %v2078
        %v2090 = vpop.permute.xlu0 %2089
        %2091 = vset.pattern.permute.xlu0 0
        %2092 = vperm.xlu0 %2091, %v2079
        %v2093 = vpop.permute.xlu0 %2092
        %2094 = vset.pattern.permute.xlu0 0
        %2095 = vperm.xlu0 %2094, %v2080
        %v2096 = vpop.permute.xlu0 %2095
        %2097 = vset.pattern.permute.xlu0 0
        %2098 = vperm.xlu0 %2097, %v2081
        %v2099 = vpop.permute.xlu0 %2098
        %2100 = vset.pattern.permute.xlu0 0
        %2101 = vperm.xlu0 %2100, %v2082
        %v2102 = vpop.permute.xlu0 %2101
        %2103 = vset.pattern.permute.xlu0 0
        %2104 = vperm.xlu0 %2103, %v2083
        %v2105 = vpop.permute.xlu0 %2104
        %2106 = vset.pattern.permute.xlu0 0
        %2107 = vperm.xlu0 %2106, %v2084
        %v2108 = vpop.permute.xlu0 %2107
        %vm2109 = vcmp.eq.s32.totalorder %v2087, 1
        %vm2110 = vcmp.eq.s32.totalorder %v2090, 1
        %vm2111 = vcmp.eq.s32.totalorder %v2093, 1
        %vm2112 = vcmp.eq.s32.totalorder %v2096, 1
        %vm2113 = vcmp.eq.s32.totalorder %v2099, 1
        %vm2114 = vcmp.eq.s32.totalorder %v2102, 1
        %vm2115 = vcmp.eq.s32.totalorder %v2105, 1
        %vm2116 = vcmp.eq.s32.totalorder %v2108, 1
        %v2117 = vsel %vm2109, %v1030, 0.0
        %v2118 = vsel %vm2110, %v1029, 0.0
        %v2119 = vsel %vm2111, %v1028, 0.0
        %v2120 = vsel %vm2112, %v1027, 0.0
        %v2121 = vsel %vm2113, %v1026, 0.0
        %v2122 = vsel %vm2114, %v1025, 0.0
        %v2123 = vsel %vm2115, %v1032, 0.0
        %v2124 = vsel %vm2116, %v1031, 0.0
        %s2125 = scalar_lea.vmem [#allocation3], 1024
        %v2126 = vld [vmem:[%s2125] sm:$0xff]
        %v2127 = vld [vmem:[%s2125 + $0x8] sm:$0xff]
        %v2128 = vld [vmem:[%s2125 + $0x10] sm:$0xff]
        %v2129 = vld [vmem:[%s2125 + $0x18] sm:$0xff]
        %v2130 = vld [vmem:[%s2125 + $0x20] sm:$0xff]
        %v2131 = vld [vmem:[%s2125 + $0x28] sm:$0xff]
        %v2132 = vld [vmem:[%s2125 + $0x30] sm:$0xff]
        %v2133 = vld [vmem:[%s2125 + $0x38] sm:$0xff]
        %v2134 = vld [vmem:[%s2125 + $0x40] sm:$0xff]
        %v2135 = vld [vmem:[%s2125 + $0x48] sm:$0xff]
        %v2136 = vld [vmem:[%s2125 + $0x50] sm:$0xff]
        %v2137 = vld [vmem:[%s2125 + $0x58] sm:$0xff]
        %v2138 = vld [vmem:[%s2125 + $0x60] sm:$0xff]
        %v2139 = vld [vmem:[%s2125 + $0x68] sm:$0xff]
        %v2140 = vld [vmem:[%s2125 + $0x70] sm:$0xff]
        %v2141 = vld [vmem:[%s2125 + $0x78] sm:$0xff]
        %2142 = vmatprep.subr.mxu0 0.0
        %2143 = vmatpush1.msra.mxu0 %v2126
        %2144 = vmatprep.subr.mxu0 0.0
        %2145 = vmatpush1.msra.mxu0 %v2127
        %2146 = vmatprep.subr.mxu0 0.0
        %2147 = vmatpush1.msra.mxu0 %v2128
        %2148 = vmatprep.subr.mxu0 0.0
        %2149 = vmatpush1.msra.mxu0 %v2129
        %2150 = vmatprep.subr.mxu0 0.0
        %2151 = vmatpush1.msra.mxu0 %v2130
        %2152 = vmatprep.subr.mxu0 0.0
        %2153 = vmatpush1.msra.mxu0 %v2131
        %2154 = vmatprep.subr.mxu0 0.0
        %2155 = vmatpush1.msra.mxu0 %v2132
        %2156 = vmatprep.subr.mxu0 0.0
        %2157 = vmatpush1.msra.mxu0 %v2133
        %2158 = vmatprep.subr.mxu0 0.0
        %2159 = vmatpush1.msra.mxu0 %v2134
        %2160 = vmatprep.subr.mxu0 0.0
        %2161 = vmatpush1.msra.mxu0 %v2135
        %2162 = vmatprep.subr.mxu0 0.0
        %2163 = vmatpush1.msra.mxu0 %v2136
        %2164 = vmatprep.subr.mxu0 0.0
        %2165 = vmatpush1.msra.mxu0 %v2137
        %2166 = vmatprep.subr.mxu0 0.0
        %2167 = vmatpush1.msra.mxu0 %v2138
        %2168 = vmatprep.subr.mxu0 0.0
        %2169 = vmatpush1.msra.mxu0 %v2139
        %2170 = vmatprep.subr.mxu0 0.0
        %2171 = vmatpush1.msra.mxu0 %v2140
        %2172 = vmatprep.subr.mxu0 0.0
        %2173 = vmatpush1.msra.mxu0 %v2141
        %2174 = vmatprep.subr.mxu0 0.0
        %2175 = vmatpush1.msra.mxu0 0.0
        %2176 = vmatprep.subr.mxu0 0.0
        %2177 = vmatpush1.msra.mxu0 0.0
        %2178 = vmatprep.subr.mxu0 0.0
        %2179 = vmatpush1.msra.mxu0 0.0
        %2180 = vmatprep.subr.mxu0 0.0
        %2181 = vmatpush1.msra.mxu0 0.0
        %2182 = vmatprep.subr.mxu0 0.0
        %2183 = vmatpush1.msra.mxu0 0.0
        %2184 = vmatprep.subr.mxu0 0.0
        %2185 = vmatpush1.msra.mxu0 0.0
        %2186 = vmatprep.subr.mxu0 0.0
        %2187 = vmatpush1.msra.mxu0 0.0
        %2188 = vmatprep.subr.mxu0 0.0
        %2189 = vmatpush1.msra.mxu0 0.0
        %2190 = vmatprep.subr.mxu0 0.0
        %2191 = vmatpush1.msra.mxu0 0.0
        %2192 = vmatprep.subr.mxu0 0.0
        %2193 = vmatpush1.msra.mxu0 0.0
        %2194 = vmatprep.subr.mxu0 0.0
        %2195 = vmatpush1.msra.mxu0 0.0
        %2196 = vmatprep.subr.mxu0 0.0
        %2197 = vmatpush1.msra.mxu0 0.0
        %2198 = vmatprep.subr.mxu0 0.0
        %2199 = vmatpush1.msra.mxu0 0.0
        %2200 = vmatprep.subr.mxu0 0.0
        %2201 = vmatpush1.msra.mxu0 0.0
        %2202 = vmatprep.subr.mxu0 0.0
        %2203 = vmatpush1.msra.mxu0 0.0
        %2204 = vmatprep.subr.mxu0 0.0
        %2205 = vmatpush1.msra.mxu0 0.0
        %2206 = vmatprep.mubr.f32.mxu0 0.0
        %2207 = vmatmul.mubr.f32.gmra.mrb[0].mxu0 %v2117
        %v2208 = vpop.f32.mrb[0].mxu0
        %v2209 = vadd.f32 0.0, %v2208
        %v2210 = vpop.f32.mrb[0].mxu0
        %2211 = vmatprep.mubr.f32.mxu0 0.0
        %2212 = vmatmul.mubr.f32.gmra.mrb[0].mxu0 %v2118
        %v2213 = vpop.f32.mrb[0].mxu0
        %v2214 = vadd.f32 0.0, %v2213
        %v2215 = vpop.f32.mrb[0].mxu0
        %2216 = vmatprep.mubr.f32.mxu0 0.0
        %2217 = vmatmul.mubr.f32.gmra.mrb[0].mxu0 %v2119
        %v2218 = vpop.f32.mrb[0].mxu0
        %v2219 = vadd.f32 0.0, %v2218
        %v2220 = vpop.f32.mrb[0].mxu0
        %2221 = vmatprep.mubr.f32.mxu0 0.0
        %2222 = vmatmul.mubr.f32.gmra.mrb[0].mxu0 %v2120
        %v2223 = vpop.f32.mrb[0].mxu0
        %v2224 = vadd.f32 0.0, %v2223
        %v2225 = vpop.f32.mrb[0].mxu0
        %2226 = vmatprep.mubr.f32.mxu0 0.0
        %2227 = vmatmul.mubr.f32.gmra.mrb[0].mxu0 %v2121
        %v2228 = vpop.f32.mrb[0].mxu0
        %v2229 = vadd.f32 0.0, %v2228
        %v2230 = vpop.f32.mrb[0].mxu0
        %2231 = vmatprep.mubr.f32.mxu0 0.0
        %2232 = vmatmul.mubr.f32.gmra.mrb[0].mxu0 %v2122
        %v2233 = vpop.f32.mrb[0].mxu0
        %v2234 = vadd.f32 0.0, %v2233
        %v2235 = vpop.f32.mrb[0].mxu0
        %2236 = vmatprep.mubr.f32.mxu0 0.0
        %2237 = vmatmul.mubr.f32.gmra.mrb[0].mxu0 %v2123
        %v2238 = vpop.f32.mrb[0].mxu0
        %v2239 = vadd.f32 0.0, %v2238
        %v2240 = vpop.f32.mrb[0].mxu0
        %2241 = vmatprep.mubr.f32.mxu0 0.0
        %2242 = vmatmul.mubr.f32.gmra.mrb[0].mxu0 %v2124
        %v2243 = vpop.f32.mrb[0].mxu0
        %v2244 = vadd.f32 0.0, %v2243
        %v2245 = vpop.f32.mrb[0].mxu0
        %2246 = vdwg.mxu0
        %v2247 = vadd.f32 %v2061, %v2209
        %v2248 = vadd.f32 %v2062, %v2214
        %v2249 = vadd.f32 %v2063, %v2219
        %v2250 = vadd.f32 %v2064, %v2224
        %v2251 = vadd.f32 %v2065, %v2229
        %v2252 = vadd.f32 %v2066, %v2234
        %v2253 = vadd.f32 %v2067, %v2239
        %v2254 = vadd.f32 %v2068, %v2244
        %v2255 = vld [vmem:[%s4] sm:$0x1]
        %v2257 = vlaneseq
        %v2258 = vshrl.u32 %v2257, 7
        %v2259 = vsub.s32 0, %v2258
        %v2260 = vrot.slane %v2255, %v2259
        %v2262 = vadd.f32 %v2247, %v2260
        %v2263 = vadd.f32 %v2248, %v2260
        %v2264 = vadd.f32 %v2249, %v2260
        %v2265 = vadd.f32 %v2250, %v2260
        %v2266 = vadd.f32 %v2251, %v2260
        %v2267 = vadd.f32 %v2252, %v2260
        %v2268 = vadd.f32 %v2253, %v2260
        %v2269 = vadd.f32 %v2254, %v2260
        %v2270 = vld [vmem:[%s439] sm:$0xff]
        %v2271 = vld [vmem:[%s439 + $0x8] sm:$0xff]
        %v2272 = vld [vmem:[%s439 + $0x10] sm:$0xff]
        %v2273 = vld [vmem:[%s439 + $0x18] sm:$0xff]
        %v2274 = vld [vmem:[%s439 + $0x20] sm:$0xff]
        %v2275 = vld [vmem:[%s439 + $0x28] sm:$0xff]
        %v2276 = vld [vmem:[%s439 + $0x30] sm:$0xff]
        %v2277 = vld [vmem:[%s439 + $0x38] sm:$0xff]
        %v2278 = vld [vmem:[%s8] sm:$0xf]
        %vm2279 = vcmask 31744
        %v2281 = vsel %vm2279, %v2270, 0
        %v2284 = vsel %vm2279, %v2271, 0
        %v2287 = vsel %vm2279, %v2272, 0
        %v2290 = vsel %vm2279, %v2273, 0
        %v2293 = vsel %vm2279, %v2274, 0
        %v2296 = vsel %vm2279, %v2275, 0
        %v2299 = vsel %vm2279, %v2276, 0
        %v2302 = vsel %vm2279, %v2277, 0
        %vm2304 = vcmask 1043456
        %v2306 = vsel %vm2304, %v2278, 0
        %2308 = vmatprep.subr.mxu0 0.0
        %2309 = vmatpush1.msra.mxu0 %v2306
        %2310 = vmatprep.subr.mxu0 0.0
        %2311 = vmatpush1.msra.mxu0 0.0
        %2312 = vmatprep.subr.mxu0 0.0
        %2313 = vmatpush1.msra.mxu0 0.0
        %2314 = vmatprep.subr.mxu0 0.0
        %2315 = vmatpush1.msra.mxu0 0.0
        %2316 = vmatprep.subr.mxu0 0.0
        %2317 = vmatpush1.msra.mxu0 0.0
        %2318 = vmatprep.subr.mxu0 0.0
        %2319 = vmatpush1.msra.mxu0 0.0
        %2320 = vmatprep.subr.mxu0 0.0
        %2321 = vmatpush1.msra.mxu0 0.0
        %2322 = vmatprep.subr.mxu0 0.0
        %2323 = vmatpush1.msra.mxu0 0.0
        %2324 = vmatprep.subr.mxu0 0.0
        %2325 = vmatpush1.msra.mxu0 0.0
        %2326 = vmatprep.subr.mxu0 0.0
        %2327 = vmatpush1.msra.mxu0 0.0
        %2328 = vmatprep.subr.mxu0 0.0
        %2329 = vmatpush1.msra.mxu0 0.0
        %2330 = vmatprep.subr.mxu0 0.0
        %2331 = vmatpush1.msra.mxu0 0.0
        %2332 = vmatprep.subr.mxu0 0.0
        %2333 = vmatpush1.msra.mxu0 0.0
        %2334 = vmatprep.subr.mxu0 0.0
        %2335 = vmatpush1.msra.mxu0 0.0
        %2336 = vmatprep.subr.mxu0 0.0
        %2337 = vmatpush1.msra.mxu0 0.0
        %2338 = vmatprep.subr.mxu0 0.0
        %2339 = vmatpush1.msra.mxu0 0.0
        %2340 = vmatprep.subr.mxu0 0.0
        %2341 = vmatpush1.msra.mxu0 0.0
        %2342 = vmatprep.subr.mxu0 0.0
        %2343 = vmatpush1.msra.mxu0 0.0
        %2344 = vmatprep.subr.mxu0 0.0
        %2345 = vmatpush1.msra.mxu0 0.0
        %2346 = vmatprep.subr.mxu0 0.0
        %2347 = vmatpush1.msra.mxu0 0.0
        %2348 = vmatprep.subr.mxu0 0.0
        %2349 = vmatpush1.msra.mxu0 0.0
        %2350 = vmatprep.subr.mxu0 0.0
        %2351 = vmatpush1.msra.mxu0 0.0
        %2352 = vmatprep.subr.mxu0 0.0
        %2353 = vmatpush1.msra.mxu0 0.0
        %2354 = vmatprep.subr.mxu0 0.0
        %2355 = vmatpush1.msra.mxu0 0.0
        %2356 = vmatprep.subr.mxu0 0.0
        %2357 = vmatpush1.msra.mxu0 0.0
        %2358 = vmatprep.subr.mxu0 0.0
        %2359 = vmatpush1.msra.mxu0 0.0
        %2360 = vmatprep.subr.mxu0 0.0
        %2361 = vmatpush1.msra.mxu0 0.0
        %2362 = vmatprep.subr.mxu0 0.0
        %2363 = vmatpush1.msra.mxu0 0.0
        %2364 = vmatprep.subr.mxu0 0.0
        %2365 = vmatpush1.msra.mxu0 0.0
        %2366 = vmatprep.subr.mxu0 0.0
        %2367 = vmatpush1.msra.mxu0 0.0
        %2368 = vmatprep.subr.mxu0 0.0
        %2369 = vmatpush1.msra.mxu0 0.0
        %2370 = vmatprep.subr.mxu0 0.0
        %2371 = vmatpush1.msra.mxu0 0.0
        %2372 = vmatprep.mubr.f32.mxu0 0.0
        %2373 = vmatmul.mubr.f32.gmra.mrb[0].mxu0 %v2281
        %v2374 = vpop.f32.mrb[0].mxu0
        %v2375 = vadd.f32 0.0, %v2374
        %v2376 = vpop.f32.mrb[0].mxu0
        %2377 = vmatprep.mubr.f32.mxu0 0.0
        %2378 = vmatmul.mubr.f32.gmra.mrb[0].mxu0 %v2284
        %v2379 = vpop.f32.mrb[0].mxu0
        %v2380 = vadd.f32 0.0, %v2379
        %v2381 = vpop.f32.mrb[0].mxu0
        %2382 = vmatprep.mubr.f32.mxu0 0.0
        %2383 = vmatmul.mubr.f32.gmra.mrb[0].mxu0 %v2287
        %v2384 = vpop.f32.mrb[0].mxu0
        %v2385 = vadd.f32 0.0, %v2384
        %v2386 = vpop.f32.mrb[0].mxu0
        %2387 = vmatprep.mubr.f32.mxu0 0.0
        %2388 = vmatmul.mubr.f32.gmra.mrb[0].mxu0 %v2290
        %v2389 = vpop.f32.mrb[0].mxu0
        %v2390 = vadd.f32 0.0, %v2389
        %v2391 = vpop.f32.mrb[0].mxu0
        %2392 = vmatprep.mubr.f32.mxu0 0.0
        %2393 = vmatmul.mubr.f32.gmra.mrb[0].mxu0 %v2293
        %v2394 = vpop.f32.mrb[0].mxu0
        %v2395 = vadd.f32 0.0, %v2394
        %v2396 = vpop.f32.mrb[0].mxu0
        %2397 = vmatprep.mubr.f32.mxu0 0.0
        %2398 = vmatmul.mubr.f32.gmra.mrb[0].mxu0 %v2296
        %v2399 = vpop.f32.mrb[0].mxu0
        %v2400 = vadd.f32 0.0, %v2399
        %v2401 = vpop.f32.mrb[0].mxu0
        %2402 = vmatprep.mubr.f32.mxu0 0.0
        %2403 = vmatmul.mubr.f32.gmra.mrb[0].mxu0 %v2299
        %v2404 = vpop.f32.mrb[0].mxu0
        %v2405 = vadd.f32 0.0, %v2404
        %v2406 = vpop.f32.mrb[0].mxu0
        %2407 = vmatprep.mubr.f32.mxu0 0.0
        %2408 = vmatmul.mubr.f32.gmra.mrb[0].mxu0 %v2302
        %v2409 = vpop.f32.mrb[0].mxu0
        %v2410 = vadd.f32 0.0, %v2409
        %v2411 = vpop.f32.mrb[0].mxu0
        %2412 = vdwg.mxu0
        %v2413 = vadd.f32 %v2262, %v2375
        %v2414 = vadd.f32 %v2263, %v2380
        %v2415 = vadd.f32 %v2264, %v2385
        %v2416 = vadd.f32 %v2265, %v2390
        %v2417 = vadd.f32 %v2266, %v2395
        %v2418 = vadd.f32 %v2267, %v2400
        %v2419 = vadd.f32 %v2268, %v2405
        %v2420 = vadd.f32 %v2269, %v2410
        %v2421 = vld [vmem:[%s9] sm:$0x1]
        %v2423 = vlaneseq
        %v2424 = vshrl.u32 %v2423, 7
        %v2425 = vsub.s32 0, %v2424
        %v2426 = vrot.slane %v2421, %v2425
        %v2428 = vadd.f32 %v2413, %v2426
        %v2429 = vadd.f32 %v2414, %v2426
        %v2430 = vadd.f32 %v2415, %v2426
        %v2431 = vadd.f32 %v2416, %v2426
        %v2432 = vadd.f32 %v2417, %v2426
        %v2433 = vadd.f32 %v2418, %v2426
        %v2434 = vadd.f32 %v2419, %v2426
        %v2435 = vadd.f32 %v2420, %v2426
        %v2436 = vmax.f32 %v2428, 0.0
        %v2437 = vmax.f32 %v2429, 0.0
        %v2438 = vmax.f32 %v2430, 0.0
        %v2439 = vmax.f32 %v2431, 0.0
        %v2440 = vmax.f32 %v2432, 0.0
        %v2441 = vmax.f32 %v2433, 0.0
        %v2442 = vmax.f32 %v2434, 0.0
        %v2443 = vmax.f32 %v2435, 0.0
        %2444 = vst [vmem:[%s416] sm:$0xff] %v2436
        %2445 = vst [vmem:[%s416 + $0x8] sm:$0xff] %v2437
        %2446 = vst [vmem:[%s416 + $0x10] sm:$0xff] %v2438
        %2447 = vst [vmem:[%s416 + $0x18] sm:$0xff] %v2439
        %2448 = vst [vmem:[%s416 + $0x20] sm:$0xff] %v2440
        %2449 = vst [vmem:[%s416 + $0x28] sm:$0xff] %v2441
        %2450 = vst [vmem:[%s416 + $0x30] sm:$0xff] %v2442
        %2451 = vst [vmem:[%s416 + $0x38] sm:$0xff] %v2443
        %s2452 = sand.u32 %s263, 1
        %s2453 = scalar_lea.sflag [#allocation5], %s2452
        %s2454 = sand.u32 %s263, 1
        %s2455 = smul.addr %s2454, 64
        %s2456 = scalar_lea.vmem [#allocation6], %s2455
        // Predicated region
        $region65: #{tpu_custom_call.1} parent=59 // pred_check
          %p2457 = pneg %p273
        $region66: #{tpu_custom_call.1} parent=59 // pred_check_branch
          %2459 = sbr.rel (%p2457) target = $region68
        $region67: #{tpu_custom_call.1} parent=59 // pred_region
          %s2460 = smul.u32 8, %s25
          %s2462 = ssub.s32 1024, 1024
          %2463 = vsyncadd %s2453, %s2462
          %s2464 = smul.addr %s2460, 128
          %s2465 = scalar_lea.hbm %s10, %s2464
          %s2466 = sshll.u32 %s2456, 4
          %s2467 = int_to_ptr.vmem [resolvable:$true] %s2466
          %2472 = dma.vmem_to_hbm [thread:$0]  %s2467, 1024, %s2465, %s2453, 128, 128, 8
        $region68: #{tpu_custom_call.1} parent=59 // pred_fallthru
          _
      $region60: #{tpu_custom_call.1} parent=5 // pred_fallthru
        _
      %p2473 = scmp.le.s32.totalorder 2, %s20
      // Predicated region
      $region69: #{tpu_custom_call.1} parent=5 // pred_check
        %p2474 = pneg %p2473
      $region70: #{tpu_custom_call.1} parent=5 // pred_check_branch
        %2476 = sbr.rel (%p2474) target = $region72
      $region71: #{tpu_custom_call.1} parent=5 // pred_region
        %s2477 = ssub.s32 %s20, 2
        // Predicated region
        $region73: #{tpu_custom_call.1} parent=71 // pred_check
          %p2478 = pneg %p279
        $region74: #{tpu_custom_call.1} parent=71 // pred_check_branch
          %2480 = sbr.rel (%p2478) target = $region76
        $region75: #{tpu_custom_call.1} parent=71 // pred_region
          %s2481 = sand.u32 %s264, 1
          %s2482 = scalar_lea.sflag [#allocation5], %s2481
          %s2483 = sand.u32 %s264, 1
          %s2484 = smul.addr %s2483, 64
          %s2485 = scalar_lea.vmem [#allocation6], %s2484
          %2486 = dma.done %s2482, 1024
        $region76: #{tpu_custom_call.1} parent=71 // pred_fallthru
          _
      $region72: #{tpu_custom_call.1} parent=5 // pred_fallthru
        _
    $region6: #{tpu_custom_call.1} parent=1 // loop_footer
      %s24 = sadd.s32 1, %s20
    $region7: #{tpu_custom_call.1} parent=1 // loop_footer_branch
      %19 = sbr.rel target = $region3
    $region8: #{tpu_custom_call.1} parent=1 // loop_exit
      _
    %2487 = vsyncpa [#allocation4], 1
    %s2488 = scalar_lea.sflag [#allocation4], 1
    %2489 = vsyncpa %s2488, 1
    %2490 = vsyncpa [#allocation5], 1
    %s2491 = scalar_lea.sflag [#allocation5], 1
    %2492 = vsyncpa %s2491, 1

</llo_original>
